<compile_context>
chip_gen: v6e
topology: v6e:2x2x1
jax: 0.10.0
libtpu: 0.0.40
codegen_flags: <defaults>
</compile_context>

<pallas_src>
import functools

import jax
import jax.numpy as jnp
from jax.experimental import pallas as pl
from jax.experimental.pallas import tpu as pltpu


# ---------------------------------------------------------------------------
# Generation-aware tuning.
# ---------------------------------------------------------------------------
def _tpu_tuning():
    kind = ""
    try:
        kind = jax.devices()[0].device_kind.lower()
    except Exception:
        pass
    if "v7" in kind or "7x" in kind:
        # 2 TensorCores / chip, 64 MiB VMEM per TC.
        return dict(t_block=8, vmem_limit_bytes=40 * 1024 * 1024,
                    two_tensorcores=True)
    if "v5" in kind or "v6" in kind:
        # Single TensorCore, 128 MiB VMEM.
        return dict(t_block=16, vmem_limit_bytes=96 * 1024 * 1024,
                    two_tensorcores=False)
    # Unknown TPU generation: conservative defaults.
    return dict(t_block=8, vmem_limit_bytes=64 * 1024 * 1024,
                two_tensorcores=False)


def _choose_t_block(T, desired):
    """Largest divisor of T that does not exceed `desired` (so no tail block)."""
    tb = max(1, min(desired, T))
    while T % tb != 0:
        tb -= 1
    return tb


# ---------------------------------------------------------------------------
# Sequential LSTM recurrence kernel (one layer).
# ---------------------------------------------------------------------------
def lstm_block_kernel(gx_ref, whh_ref, h0_ref, c0_ref,
                      out_ref, hn_ref, cn_ref, *, hidden, t_block):
    """One grid step = `t_block` timesteps of the LSTM recurrence.

    gx_ref  : (Tb, Bb, 4H) bf16  precomputed x@W_ih^T + b_ih + b_hh
    whh_ref : (H, 4H)      bf16  resident recurrent weights (unblocked VMEM)
    h0_ref  : (Bb, H)      f32   initial hidden state for this batch block
    c0_ref  : (Bb, H)      f32   initial cell state
    out_ref : (Tb, Bb, H)  bf16  hidden states for these timesteps
    hn_ref  : (Bb, H)      f32   resident carry / final hidden state
    cn_ref  : (Bb, H)      f32   resident carry / final cell state
    """
    t_blk = pl.program_id(1)   # time-block index (sequential, "arbitrary")

    # Seed the carry from the provided init_state on the first time block.
    @pl.when(t_blk == 0)
    def _():
        hn_ref[...] = h0_ref[...]
        cn_ref[...] = c0_ref[...]

    H = hidden
    w = whh_ref[...]                       # (H, 4H) bf16, single VMEM copy
    h = hn_ref[...]                        # f32 carry from previous time block
    c = cn_ref[...]

    def step(t, carry):
        h, c = carry
        # Recurrent matmul on the MXU: bf16 operands, f32 accumulate.
        gates = gx_ref[t].astype(jnp.float32) + jnp.dot(
            h.astype(w.dtype), w, preferred_element_type=jnp.float32)
        # Gate order i, f, g, o (PyTorch LSTMCell).  sigmoid(x) is computed as
        # 0.5*(tanh(0.5*x)+1): one EUP pass instead of exp+reciprocal.
        i_g = 0.5 * (jnp.tanh(0.5 * gates[:, 0 * H:1 * H]) + 1.0)
        f_g = 0.5 * (jnp.tanh(0.5 * gates[:, 1 * H:2 * H]) + 1.0)
        g_g = jnp.tanh(gates[:, 2 * H:3 * H])
        o_g = 0.5 * (jnp.tanh(0.5 * gates[:, 3 * H:4 * H]) + 1.0)
        c = f_g * c + i_g * g_g
        h = o_g * jnp.tanh(c)
        out_ref[t] = h.astype(out_ref.dtype)   # bf16 hidden-sequence stream
        return h, c

    h, c = jax.lax.fori_loop(0, t_block, step, (h, c), unroll=True)

    # Single f32 carry writeback per time block (not per timestep).
    hn_ref[...] = h
    cn_ref[...] = c


def lstm_layer_pallas(gates_x, w_hh_t_bf16, h0, c0, *,
                      t_block, vmem_limit_bytes, two_tensorcores):
    """Run one LSTM layer over the whole (time-major) sequence."""
    T, B, G = gates_x.shape
    H = G // 4
    assert T % t_block == 0, (T, t_block)
    nt = T // t_block

    # Batch split across TensorCores: only worthwhile on 2-TC chips (v7x) and
    # only when each half keeps a >=128-row, sublane-aligned MXU M dimension.
    nb = 2 if (two_tensorcores and B % 2 == 0
               and (B // 2) % 8 == 0 and (B // 2) >= 128) else 1
    Bb = B // nb

    kernel = functools.partial(lstm_block_kernel, hidden=H, t_block=t_block)

    grid_spec = pltpu.PrefetchScalarGridSpec(
        num_scalar_prefetch=0,
        grid=(nb, nt),
        in_specs=[
            # gates_x tile: bf16, the dominant HBM stream.
            pl.BlockSpec((t_block, Bb, G), lambda b, t: (t, b, 0)),
            # W_hh^T: whole array resident in VMEM, single copy (no pipelining).
            pl.BlockSpec(memory_space=pltpu.MemorySpace.VMEM),
            pl.BlockSpec((Bb, H), lambda b, t: (b, 0)),              # h0
            pl.BlockSpec((Bb, H), lambda b, t: (b, 0)),              # c0
        ],
        out_specs=[
            pl.BlockSpec((t_block, Bb, H), lambda b, t: (t, b, 0)),  # hidden seq
            pl.BlockSpec((Bb, H), lambda b, t: (b, 0)),              # h_n (resident carry)
            pl.BlockSpec((Bb, H), lambda b, t: (b, 0)),              # c_n (resident carry)
        ],
    )

    out_shapes = (
        jax.ShapeDtypeStruct((T, B, H), jnp.bfloat16),   # hidden sequence (bf16)
        jax.ShapeDtypeStruct((B, H), jnp.float32),       # h_n (f32 carry)
        jax.ShapeDtypeStruct((B, H), jnp.float32),       # c_n (f32 carry)
    )

    return pl.pallas_call(
        kernel,
        out_shape=out_shapes,
        grid_spec=grid_spec,
        compiler_params=pltpu.CompilerParams(
            dimension_semantics=("parallel", "arbitrary"),
            vmem_limit_bytes=vmem_limit_bytes,
        ),
    )(gates_x, w_hh_t_bf16, h0, c0)


# ---------------------------------------------------------------------------
# Full decoder forward (contexts=None, eval / dropout=0.0).
# ---------------------------------------------------------------------------
def rnn_decoder_forward(params, inputs, init_state, *, t_block=None):
    """JAX/Pallas equivalent of rnn_decoder.forward (contexts=None, eval)."""
    tuning = _tpu_tuning()

    # Embedding lookup (glue; gather stays in plain JAX).
    emb = jnp.take(params["embedding"], inputs, axis=0)          # (B, T, E)
    B, T, _ = emb.shape
    tb = _choose_t_block(T, t_block if t_block is not None else tuning["t_block"])

    x_tm = jnp.transpose(emb, (1, 0, 2)).astype(jnp.bfloat16)    # (T, B, E) time-major

    h0, c0 = init_state                                          # (L, B, H) each
    num_layers = h0.shape[0]

    layer_in = x_tm                                              # bf16
    h_n, c_n = [], []
    for l in range(num_layers):
        w_ih = params["w_ih"][l]                                 # (4H, in_dim)
        w_hh = params["w_hh"][l]                                 # (4H, H)
        bias = (params["b_ih"][l] + params["b_hh"][l]).astype(jnp.float32)

        # Hoisted time-parallel input projection: bf16 operands, f32 accumulate,
        # bias folded in f32, then stored as bf16 for the sequential kernel.
        gates_x = (jnp.einsum(
            "tbi,gi->tbg", layer_in, w_ih.astype(jnp.bfloat16),
            preferred_element_type=jnp.float32) + bias).astype(jnp.bfloat16)

        outs_tm, h_l, c_l = lstm_layer_pallas(
            gates_x,
            jnp.transpose(w_hh).astype(jnp.bfloat16),            # (H, 4H) bf16
            h0[l].astype(jnp.float32), c0[l].astype(jnp.float32),
            t_block=tb,
            vmem_limit_bytes=tuning["vmem_limit_bytes"],
            two_tensorcores=tuning["two_tensorcores"])

        h_n.append(h_l)
        c_n.append(c_l)
        # Dropout between layers is identity at dropout=0.0 / eval.
        layer_in = outs_tm                                       # bf16

    # Final vocab projection: single time-parallel bf16 MXU GEMM, f32
    # accumulation, emitted directly in (B, T, V) layout (no extra transpose).
    outputs = jnp.einsum(
        "tbh,vh->btv", layer_in, params["w_out"].astype(jnp.bfloat16),
        preferred_element_type=jnp.float32) + params["b_out"]    # (B, T, V) f32

    state = (jnp.stack(h_n), jnp.stack(c_n))                     # (L, B, H) each
    attns = None                                                 # contexts is None
    return outputs, state, attns


# ---------------------------------------------------------------------------
# Pure-JAX f32 reference (mirrors the PyTorch module) + test harness.
# ---------------------------------------------------------------------------
def _decoder_reference(params, inputs, init_state):
    emb = jnp.take(params["embedding"], inputs, axis=0)
    x_tm = jnp.transpose(emb, (1, 0, 2)).astype(jnp.float32)
    h0, c0 = init_state
    L, _, H = h0.shape
    w_ih, w_hh = params["w_ih"], params["w_hh"]
    b_ih, b_hh = params["b_ih"], params["b_hh"]

    def cell(x, h, c, l):
        g = x @ w_ih[l].T + h @ w_hh[l].T + b_ih[l] + b_hh[l]
        i = jax.nn.sigmoid(g[:, 0 * H:1 * H])
        f = jax.nn.sigmoid(g[:, 1 * H:2 * H])
        gg = jnp.tanh(g[:, 2 * H:3 * H])
        o = jax.nn.sigmoid(g[:, 3 * H:4 * H])
        c = f * c + i * gg
        h = o * jnp.tanh(c)
        return h, c

    def step(carry, x_t):
        hs, cs = carry
        inp = x_t
        hs_new, cs_new = [], []
        for l in range(L):
            hl, cl = cell(inp, hs[l], cs[l], l)
            inp = hl
            hs_new.append(hl)
            cs_new.append(cl)
        return (tuple(hs_new), tuple(cs_new)), inp

    init = (tuple(h0[l] for l in range(L)), tuple(c0[l] for l in range(L)))
    (h_n, c_n), top_tm = jax.lax.scan(step, init, x_tm)
    logits_tm = jnp.einsum("tbh,vh->tbv", top_tm, params["w_out"]) + params["b_out"]
    return (jnp.transpose(logits_tm, (1, 0, 2)),
            (jnp.stack(h_n), jnp.stack(c_n)))


def _build_case(key, *, vocab_size, emb_size, hidden, num_layers, B, T):
    ks = jax.random.split(key, 8)

    def nrm(k, shape):
        return 0.1 * jax.random.normal(k, shape, jnp.float32)

    w_ih, w_hh, b_ih, b_hh = [], [], [], []
    in_dim = emb_size
    layer_keys = jax.random.split(ks[1], 4 * num_layers)
    ki = iter(layer_keys)
    for _ in range(num_layers):
        w_ih.append(nrm(next(ki), (4 * hidden, in_dim)))
        w_hh.append(nrm(next(ki), (4 * hidden, hidden)))
        b_ih.append(nrm(next(ki), (4 * hidden,)))
        b_hh.append(nrm(next(ki), (4 * hidden,)))
        in_dim = hidden

    params = {
        "embedding": nrm(ks[0], (vocab_size, emb_size)),
        "w_ih": w_ih, "w_hh": w_hh, "b_ih": b_ih, "b_hh": b_hh,
        "w_out": nrm(ks[2], (vocab_size, hidden)),   # self.linear weight (V, H)
        "b_out": nrm(ks[3], (vocab_size,)),          # self.linear bias   (V,)
    }
    init_state = (nrm(ks[4], (num_layers, B, hidden)),
                  nrm(ks[5], (num_layers, B, hidden)))
    ids = jax.random.randint(ks[6], (B, T), 1, vocab_size, dtype=jnp.int32)
    return params, ids, init_state


def _check_case(name, key, **cfg):
    params, ids, init_state = _build_case(key, **cfg)
    outputs, (h_n, c_n), attns = rnn_decoder_forward(params, ids, init_state)
    jax.block_until_ready((outputs, h_n, c_n))

    ref_out, (ref_h, ref_c) = _decoder_reference(params, ids, init_state)
    B, T = ids.shape
    assert outputs.shape == (B, T, cfg["vocab_size"]), name
    assert h_n.shape == (cfg["num_layers"], B, cfg["hidden"]), name
    assert c_n.shape == (cfg["num_layers"], B, cfg["hidden"]), name
    assert attns is None, name
    # Tolerance accounts for the bf16 MXU matmuls / bf16 gates_x & hidden stream.
    assert jnp.allclose(outputs, ref_out, atol=3e-2, rtol=3e-2), name
    assert jnp.allclose(h_n, ref_h, atol=3e-2, rtol=3e-2), name
    assert jnp.allclose(c_n, ref_c, atol=3e-2, rtol=3e-2), name


if __name__ == "__main__":
    key = jax.random.PRNGKey(0)
    k1, k2 = jax.random.split(key)

    # Toy shape (matches the module's small-config defaults).
    _check_case("toy", k1, vocab_size=50, emb_size=32, hidden=32,
                num_layers=2, B=2, T=8)
    # Lane/sublane-aligned shape that exercises the lane-dense layout paths.
    _check_case("aligned", k2, vocab_size=256, emb_size=128, hidden=128,
                num_layers=2, B=16, T=16)

    print("KERNEL_OK")
</pallas_src>

<mosaic_0001>
module attributes {stable_mosaic.version = 11 : i64} {
  func.func @lstm_block_kernel(%arg0: i32, %arg1: i32, %arg2: memref<8x2x128xbf16, #tpu.memory_space<vmem>>, %arg3: memref<32x128xbf16, #tpu.memory_space<vmem>>, %arg4: memref<2x32xf32, #tpu.memory_space<vmem>>, %arg5: memref<2x32xf32, #tpu.memory_space<vmem>>, %arg6: memref<8x2x32xbf16, #tpu.memory_space<vmem>>, %arg7: memref<2x32xf32, #tpu.memory_space<vmem>>, %arg8: memref<2x32xf32, #tpu.memory_space<vmem>>) attributes {dimension_semantics = [#tpu.dimension_semantics<parallel>, #tpu.dimension_semantics<arbitrary>], iteration_bounds = array<i64: 1, 1>, scalar_prefetch = 0 : i64, scratch_operands = 0 : i64, tpu.core_type = #tpu.core_type<tc>, window_params = [{transform_indices = @transform_0, window_bounds = array<i64: 8, 2, 128>}, {pipeline_mode = #tpu.pipeline_mode<synchronous>, transform_indices = @transform_1, window_bounds = array<i64: 32, 128>}, {transform_indices = @transform_2, window_bounds = array<i64: 2, 32>}, {transform_indices = @transform_3, window_bounds = array<i64: 2, 32>}, {transform_indices = @transform_4, window_bounds = array<i64: 8, 2, 32>}, {transform_indices = @transform_5, window_bounds = array<i64: 2, 32>}, {transform_indices = @transform_6, window_bounds = array<i64: 2, 32>}]} {
    %c0_i32 = arith.constant 0 : i32
    %0 = arith.cmpi eq, %arg1, %c0_i32 : i32
    %1 = arith.extui %0 : i1 to i32
    %c0_i32_0 = arith.constant 0 : i32
    %2 = arith.cmpi ne, %1, %c0_i32_0 : i32
    scf.if %2 {
      %c0_122 = arith.constant 0 : index
      %c0_123 = arith.constant 0 : index
      %352 = vector.load %arg4[%c0_122, %c0_123] : memref<2x32xf32, #tpu.memory_space<vmem>>, vector<2x32xf32>
      %c0_124 = arith.constant 0 : index
      %c0_125 = arith.constant 0 : index
      %353 = vector.load %arg7[%c0_124, %c0_125] : memref<2x32xf32, #tpu.memory_space<vmem>>, vector<2x32xf32>
      tpu.vector_store %arg7[%c0_124, %c0_125], %352 {strides = array<i32>} : memref<2x32xf32, #tpu.memory_space<vmem>>, vector<2x32xf32>,
      %c0_126 = arith.constant 0 : index
      %c0_127 = arith.constant 0 : index
      %354 = vector.load %arg5[%c0_126, %c0_127] : memref<2x32xf32, #tpu.memory_space<vmem>>, vector<2x32xf32>
      %c0_128 = arith.constant 0 : index
      %c0_129 = arith.constant 0 : index
      %355 = vector.load %arg8[%c0_128, %c0_129] : memref<2x32xf32, #tpu.memory_space<vmem>>, vector<2x32xf32>
      tpu.vector_store %arg8[%c0_128, %c0_129], %354 {strides = array<i32>} : memref<2x32xf32, #tpu.memory_space<vmem>>, vector<2x32xf32>,
    } else {
    }
    %c0 = arith.constant 0 : index
    %c0_1 = arith.constant 0 : index
    %3 = vector.load %arg3[%c0, %c0_1] : memref<32x128xbf16, #tpu.memory_space<vmem>>, vector<32x128xbf16>
    %c0_2 = arith.constant 0 : index
    %c0_3 = arith.constant 0 : index
    %4 = vector.load %arg7[%c0_2, %c0_3] : memref<2x32xf32, #tpu.memory_space<vmem>>, vector<2x32xf32>
    %c0_4 = arith.constant 0 : index
    %c0_5 = arith.constant 0 : index
    %5 = vector.load %arg8[%c0_4, %c0_5] : memref<2x32xf32, #tpu.memory_space<vmem>>, vector<2x32xf32>
    %c0_i32_6 = arith.constant 0 : i32
    %6 = arith.index_cast %c0_i32_6 : i32 to index
    %c0_7 = arith.constant 0 : index
    %c0_8 = arith.constant 0 : index
    %7 = vector.load %arg2[%6, %c0_7, %c0_8] : memref<8x2x128xbf16, #tpu.memory_space<vmem>>, vector<1x2x128xbf16>
    %8 = vector.shape_cast %7 : vector<1x2x128xbf16> to vector<2x128xbf16>
    %9 = arith.extf %8 : vector<2x128xbf16> to vector<2x128xf32>
    %10 = arith.truncf %4 : vector<2x32xf32> to vector<2x32xbf16>
    %cst = arith.constant dense<0.000000e+00> : vector<2x128xf32>
    %11 = tpu.matmul %10, %3, %cst {dimension_numbers = #tpu.dot_dimension_numbers<[1], [0], [0], [1], [0, 0, 1, 1], [], []>} : vector<2x32xbf16>, vector<32x128xbf16>, vector<2x128xf32> -> vector<2x128xf32>
    %12 = arith.addf %9, %11 : vector<2x128xf32>
    %13 = vector.extract_strided_slice %12 {offsets = [0, 0], sizes = [2, 32], strides = [1, 1]} : vector<2x128xf32> to vector<2x32xf32>
    %cst_9 = arith.constant 5.000000e-01 : f32
    %14 = vector.broadcast %cst_9 : f32 to vector<2x32xf32>
    %15 = arith.mulf %14, %13 : vector<2x32xf32>
    %16 = math.tanh %15 : vector<2x32xf32>
    %cst_10 = arith.constant 1.000000e+00 : f32
    %17 = vector.broadcast %cst_10 : f32 to vector<2x32xf32>
    %18 = arith.addf %16, %17 : vector<2x32xf32>
    %cst_11 = arith.constant 5.000000e-01 : f32
    %19 = vector.broadcast %cst_11 : f32 to vector<2x32xf32>
    %20 = arith.mulf %19, %18 : vector<2x32xf32>
    %21 = vector.extract_strided_slice %12 {offsets = [0, 32], sizes = [2, 32], strides = [1, 1]} : vector<2x128xf32> to vector<2x32xf32>
    %cst_12 = arith.constant 5.000000e-01 : f32
    %22 = vector.broadcast %cst_12 : f32 to vector<2x32xf32>
    %23 = arith.mulf %22, %21 : vector<2x32xf32>
    %24 = math.tanh %23 : vector<2x32xf32>
    %cst_13 = arith.constant 1.000000e+00 : f32
    %25 = vector.broadcast %cst_13 : f32 to vector<2x32xf32>
    %26 = arith.addf %24, %25 : vector<2x32xf32>
    %cst_14 = arith.constant 5.000000e-01 : f32
    %27 = vector.broadcast %cst_14 : f32 to vector<2x32xf32>
    %28 = arith.mulf %27, %26 : vector<2x32xf32>
    %29 = vector.extract_strided_slice %12 {offsets = [0, 64], sizes = [2, 32], strides = [1, 1]} : vector<2x128xf32> to vector<2x32xf32>
    %30 = math.tanh %29 : vector<2x32xf32>
    %31 = vector.extract_strided_slice %12 {offsets = [0, 96], sizes = [2, 32], strides = [1, 1]} : vector<2x128xf32> to vector<2x32xf32>
    %cst_15 = arith.constant 5.000000e-01 : f32
    %32 = vector.broadcast %cst_15 : f32 to vector<2x32xf32>
    %33 = arith.mulf %32, %31 : vector<2x32xf32>
    %34 = math.tanh %33 : vector<2x32xf32>
    %cst_16 = arith.constant 1.000000e+00 : f32
    %35 = vector.broadcast %cst_16 : f32 to vector<2x32xf32>
    %36 = arith.addf %34, %35 : vector<2x32xf32>
    %cst_17 = arith.constant 5.000000e-01 : f32
    %37 = vector.broadcast %cst_17 : f32 to vector<2x32xf32>
    %38 = arith.mulf %37, %36 : vector<2x32xf32>
    %39 = arith.mulf %28, %5 : vector<2x32xf32>
    %40 = arith.mulf %20, %30 : vector<2x32xf32>
    %41 = arith.addf %39, %40 : vector<2x32xf32>
    %42 = math.tanh %41 : vector<2x32xf32>
    %43 = arith.mulf %38, %42 : vector<2x32xf32>
    %44 = arith.truncf %43 : vector<2x32xf32> to vector<2x32xbf16>
    %45 = arith.index_cast %c0_i32_6 : i32 to index
    %c0_18 = arith.constant 0 : index
    %c0_19 = arith.constant 0 : index
    %46 = vector.load %arg6[%45, %c0_18, %c0_19] : memref<8x2x32xbf16, #tpu.memory_space<vmem>>, vector<1x2x32xbf16>
    %47 = vector.shape_cast %46 : vector<1x2x32xbf16> to vector<2x32xbf16>
    %48 = vector.shape_cast %44 : vector<2x32xbf16> to vector<1x2x32xbf16>
    tpu.vector_store %arg6[%45, %c0_18, %c0_19], %48 {strides = array<i32>} : memref<8x2x32xbf16, #tpu.memory_space<vmem>>, vector<1x2x32xbf16>,
    %c1_i32 = arith.constant 1 : i32
    %49 = arith.index_cast %c1_i32 : i32 to index
    %c0_20 = arith.constant 0 : index
    %c0_21 = arith.constant 0 : index
    %50 = vector.load %arg2[%49, %c0_20, %c0_21] : memref<8x2x128xbf16, #tpu.memory_space<vmem>>, vector<1x2x128xbf16>
    %51 = vector.shape_cast %50 : vector<1x2x128xbf16> to vector<2x128xbf16>
    %52 = arith.extf %51 : vector<2x128xbf16> to vector<2x128xf32>
    %53 = arith.truncf %43 : vector<2x32xf32> to vector<2x32xbf16>
    %cst_22 = arith.constant dense<0.000000e+00> : vector<2x128xf32>
    %54 = tpu.matmul %53, %3, %cst_22 {dimension_numbers = #tpu.dot_dimension_numbers<[1], [0], [0], [1], [0, 0, 1, 1], [], []>} : vector<2x32xbf16>, vector<32x128xbf16>, vector<2x128xf32> -> vector<2x128xf32>
    %55 = arith.addf %52, %54 : vector<2x128xf32>
    %56 = vector.extract_strided_slice %55 {offsets = [0, 0], sizes = [2, 32], strides = [1, 1]} : vector<2x128xf32> to vector<2x32xf32>
    %cst_23 = arith.constant 5.000000e-01 : f32
    %57 = vector.broadcast %cst_23 : f32 to vector<2x32xf32>
    %58 = arith.mulf %57, %56 : vector<2x32xf32>
    %59 = math.tanh %58 : vector<2x32xf32>
    %cst_24 = arith.constant 1.000000e+00 : f32
    %60 = vector.broadcast %cst_24 : f32 to vector<2x32xf32>
    %61 = arith.addf %59, %60 : vector<2x32xf32>
    %cst_25 = arith.constant 5.000000e-01 : f32
    %62 = vector.broadcast %cst_25 : f32 to vector<2x32xf32>
    %63 = arith.mulf %62, %61 : vector<2x32xf32>
    %64 = vector.extract_strided_slice %55 {offsets = [0, 32], sizes = [2, 32], strides = [1, 1]} : vector<2x128xf32> to vector<2x32xf32>
    %cst_26 = arith.constant 5.000000e-01 : f32
    %65 = vector.broadcast %cst_26 : f32 to vector<2x32xf32>
    %66 = arith.mulf %65, %64 : vector<2x32xf32>
    %67 = math.tanh %66 : vector<2x32xf32>
    %cst_27 = arith.constant 1.000000e+00 : f32
    %68 = vector.broadcast %cst_27 : f32 to vector<2x32xf32>
    %69 = arith.addf %67, %68 : vector<2x32xf32>
    %cst_28 = arith.constant 5.000000e-01 : f32
    %70 = vector.broadcast %cst_28 : f32 to vector<2x32xf32>
    %71 = arith.mulf %70, %69 : vector<2x32xf32>
    %72 = vector.extract_strided_slice %55 {offsets = [0, 64], sizes = [2, 32], strides = [1, 1]} : vector<2x128xf32> to vector<2x32xf32>
    %73 = math.tanh %72 : vector<2x32xf32>
    %74 = vector.extract_strided_slice %55 {offsets = [0, 96], sizes = [2, 32], strides = [1, 1]} : vector<2x128xf32> to vector<2x32xf32>
    %cst_29 = arith.constant 5.000000e-01 : f32
    %75 = vector.broadcast %cst_29 : f32 to vector<2x32xf32>
    %76 = arith.mulf %75, %74 : vector<2x32xf32>
    %77 = math.tanh %76 : vector<2x32xf32>
    %cst_30 = arith.constant 1.000000e+00 : f32
    %78 = vector.broadcast %cst_30 : f32 to vector<2x32xf32>
    %79 = arith.addf %77, %78 : vector<2x32xf32>
    %cst_31 = arith.constant 5.000000e-01 : f32
    %80 = vector.broadcast %cst_31 : f32 to vector<2x32xf32>
    %81 = arith.mulf %80, %79 : vector<2x32xf32>
    %82 = arith.mulf %71, %41 : vector<2x32xf32>
    %83 = arith.mulf %63, %73 : vector<2x32xf32>
    %84 = arith.addf %82, %83 : vector<2x32xf32>
    %85 = math.tanh %84 : vector<2x32xf32>
    %86 = arith.mulf %81, %85 : vector<2x32xf32>
    %87 = arith.truncf %86 : vector<2x32xf32> to vector<2x32xbf16>
    %88 = arith.index_cast %c1_i32 : i32 to index
    %c0_32 = arith.constant 0 : index
    %c0_33 = arith.constant 0 : index
    %89 = vector.load %arg6[%88, %c0_32, %c0_33] : memref<8x2x32xbf16, #tpu.memory_space<vmem>>, vector<1x2x32xbf16>
    %90 = vector.shape_cast %89 : vector<1x2x32xbf16> to vector<2x32xbf16>
    %91 = vector.shape_cast %87 : vector<2x32xbf16> to vector<1x2x32xbf16>
    tpu.vector_store %arg6[%88, %c0_32, %c0_33], %91 {strides = array<i32>} : memref<8x2x32xbf16, #tpu.memory_space<vmem>>, vector<1x2x32xbf16>,
    %c2_i32 = arith.constant 2 : i32
    %92 = arith.index_cast %c2_i32 : i32 to index
    %c0_34 = arith.constant 0 : index
    %c0_35 = arith.constant 0 : index
    %93 = vector.load %arg2[%92, %c0_34, %c0_35] : memref<8x2x128xbf16, #tpu.memory_space<vmem>>, vector<1x2x128xbf16>
    %94 = vector.shape_cast %93 : vector<1x2x128xbf16> to vector<2x128xbf16>
    %95 = arith.extf %94 : vector<2x128xbf16> to vector<2x128xf32>
    %96 = arith.truncf %86 : vector<2x32xf32> to vector<2x32xbf16>
    %cst_36 = arith.constant dense<0.000000e+00> : vector<2x128xf32>
    %97 = tpu.matmul %96, %3, %cst_36 {dimension_numbers = #tpu.dot_dimension_numbers<[1], [0], [0], [1], [0, 0, 1, 1], [], []>} : vector<2x32xbf16>, vector<32x128xbf16>, vector<2x128xf32> -> vector<2x128xf32>
    %98 = arith.addf %95, %97 : vector<2x128xf32>
    %99 = vector.extract_strided_slice %98 {offsets = [0, 0], sizes = [2, 32], strides = [1, 1]} : vector<2x128xf32> to vector<2x32xf32>
    %cst_37 = arith.constant 5.000000e-01 : f32
    %100 = vector.broadcast %cst_37 : f32 to vector<2x32xf32>
    %101 = arith.mulf %100, %99 : vector<2x32xf32>
    %102 = math.tanh %101 : vector<2x32xf32>
    %cst_38 = arith.constant 1.000000e+00 : f32
    %103 = vector.broadcast %cst_38 : f32 to vector<2x32xf32>
    %104 = arith.addf %102, %103 : vector<2x32xf32>
    %cst_39 = arith.constant 5.000000e-01 : f32
    %105 = vector.broadcast %cst_39 : f32 to vector<2x32xf32>
    %106 = arith.mulf %105, %104 : vector<2x32xf32>
    %107 = vector.extract_strided_slice %98 {offsets = [0, 32], sizes = [2, 32], strides = [1, 1]} : vector<2x128xf32> to vector<2x32xf32>
    %cst_40 = arith.constant 5.000000e-01 : f32
    %108 = vector.broadcast %cst_40 : f32 to vector<2x32xf32>
    %109 = arith.mulf %108, %107 : vector<2x32xf32>
    %110 = math.tanh %109 : vector<2x32xf32>
    %cst_41 = arith.constant 1.000000e+00 : f32
    %111 = vector.broadcast %cst_41 : f32 to vector<2x32xf32>
    %112 = arith.addf %110, %111 : vector<2x32xf32>
    %cst_42 = arith.constant 5.000000e-01 : f32
    %113 = vector.broadcast %cst_42 : f32 to vector<2x32xf32>
    %114 = arith.mulf %113, %112 : vector<2x32xf32>
    %115 = vector.extract_strided_slice %98 {offsets = [0, 64], sizes = [2, 32], strides = [1, 1]} : vector<2x128xf32> to vector<2x32xf32>
    %116 = math.tanh %115 : vector<2x32xf32>
    %117 = vector.extract_strided_slice %98 {offsets = [0, 96], sizes = [2, 32], strides = [1, 1]} : vector<2x128xf32> to vector<2x32xf32>
    %cst_43 = arith.constant 5.000000e-01 : f32
    %118 = vector.broadcast %cst_43 : f32 to vector<2x32xf32>
    %119 = arith.mulf %118, %117 : vector<2x32xf32>
    %120 = math.tanh %119 : vector<2x32xf32>
    %cst_44 = arith.constant 1.000000e+00 : f32
    %121 = vector.broadcast %cst_44 : f32 to vector<2x32xf32>
    %122 = arith.addf %120, %121 : vector<2x32xf32>
    %cst_45 = arith.constant 5.000000e-01 : f32
    %123 = vector.broadcast %cst_45 : f32 to vector<2x32xf32>
    %124 = arith.mulf %123, %122 : vector<2x32xf32>
    %125 = arith.mulf %114, %84 : vector<2x32xf32>
    %126 = arith.mulf %106, %116 : vector<2x32xf32>
    %127 = arith.addf %125, %126 : vector<2x32xf32>
    %128 = math.tanh %127 : vector<2x32xf32>
    %129 = arith.mulf %124, %128 : vector<2x32xf32>
    %130 = arith.truncf %129 : vector<2x32xf32> to vector<2x32xbf16>
    %131 = arith.index_cast %c2_i32 : i32 to index
    %c0_46 = arith.constant 0 : index
    %c0_47 = arith.constant 0 : index
    %132 = vector.load %arg6[%131, %c0_46, %c0_47] : memref<8x2x32xbf16, #tpu.memory_space<vmem>>, vector<1x2x32xbf16>
    %133 = vector.shape_cast %132 : vector<1x2x32xbf16> to vector<2x32xbf16>
    %134 = vector.shape_cast %130 : vector<2x32xbf16> to vector<1x2x32xbf16>
    tpu.vector_store %arg6[%131, %c0_46, %c0_47], %134 {strides = array<i32>} : memref<8x2x32xbf16, #tpu.memory_space<vmem>>, vector<1x2x32xbf16>,
    %c3_i32 = arith.constant 3 : i32
    %135 = arith.index_cast %c3_i32 : i32 to index
    %c0_48 = arith.constant 0 : index
    %c0_49 = arith.constant 0 : index
    %136 = vector.load %arg2[%135, %c0_48, %c0_49] : memref<8x2x128xbf16, #tpu.memory_space<vmem>>, vector<1x2x128xbf16>
    %137 = vector.shape_cast %136 : vector<1x2x128xbf16> to vector<2x128xbf16>
    %138 = arith.extf %137 : vector<2x128xbf16> to vector<2x128xf32>
    %139 = arith.truncf %129 : vector<2x32xf32> to vector<2x32xbf16>
    %cst_50 = arith.constant dense<0.000000e+00> : vector<2x128xf32>
    %140 = tpu.matmul %139, %3, %cst_50 {dimension_numbers = #tpu.dot_dimension_numbers<[1], [0], [0], [1], [0, 0, 1, 1], [], []>} : vector<2x32xbf16>, vector<32x128xbf16>, vector<2x128xf32> -> vector<2x128xf32>
    %141 = arith.addf %138, %140 : vector<2x128xf32>
    %142 = vector.extract_strided_slice %141 {offsets = [0, 0], sizes = [2, 32], strides = [1, 1]} : vector<2x128xf32> to vector<2x32xf32>
    %cst_51 = arith.constant 5.000000e-01 : f32
    %143 = vector.broadcast %cst_51 : f32 to vector<2x32xf32>
    %144 = arith.mulf %143, %142 : vector<2x32xf32>
    %145 = math.tanh %144 : vector<2x32xf32>
    %cst_52 = arith.constant 1.000000e+00 : f32
    %146 = vector.broadcast %cst_52 : f32 to vector<2x32xf32>
    %147 = arith.addf %145, %146 : vector<2x32xf32>
    %cst_53 = arith.constant 5.000000e-01 : f32
    %148 = vector.broadcast %cst_53 : f32 to vector<2x32xf32>
    %149 = arith.mulf %148, %147 : vector<2x32xf32>
    %150 = vector.extract_strided_slice %141 {offsets = [0, 32], sizes = [2, 32], strides = [1, 1]} : vector<2x128xf32> to vector<2x32xf32>
    %cst_54 = arith.constant 5.000000e-01 : f32
    %151 = vector.broadcast %cst_54 : f32 to vector<2x32xf32>
    %152 = arith.mulf %151, %150 : vector<2x32xf32>
    %153 = math.tanh %152 : vector<2x32xf32>
    %cst_55 = arith.constant 1.000000e+00 : f32
    %154 = vector.broadcast %cst_55 : f32 to vector<2x32xf32>
    %155 = arith.addf %153, %154 : vector<2x32xf32>
    %cst_56 = arith.constant 5.000000e-01 : f32
    %156 = vector.broadcast %cst_56 : f32 to vector<2x32xf32>
    %157 = arith.mulf %156, %155 : vector<2x32xf32>
    %158 = vector.extract_strided_slice %141 {offsets = [0, 64], sizes = [2, 32], strides = [1, 1]} : vector<2x128xf32> to vector<2x32xf32>
    %159 = math.tanh %158 : vector<2x32xf32>
    %160 = vector.extract_strided_slice %141 {offsets = [0, 96], sizes = [2, 32], strides = [1, 1]} : vector<2x128xf32> to vector<2x32xf32>
    %cst_57 = arith.constant 5.000000e-01 : f32
    %161 = vector.broadcast %cst_57 : f32 to vector<2x32xf32>
    %162 = arith.mulf %161, %160 : vector<2x32xf32>
    %163 = math.tanh %162 : vector<2x32xf32>
    %cst_58 = arith.constant 1.000000e+00 : f32
    %164 = vector.broadcast %cst_58 : f32 to vector<2x32xf32>
    %165 = arith.addf %163, %164 : vector<2x32xf32>
    %cst_59 = arith.constant 5.000000e-01 : f32
    %166 = vector.broadcast %cst_59 : f32 to vector<2x32xf32>
    %167 = arith.mulf %166, %165 : vector<2x32xf32>
    %168 = arith.mulf %157, %127 : vector<2x32xf32>
    %169 = arith.mulf %149, %159 : vector<2x32xf32>
    %170 = arith.addf %168, %169 : vector<2x32xf32>
    %171 = math.tanh %170 : vector<2x32xf32>
    %172 = arith.mulf %167, %171 : vector<2x32xf32>
    %173 = arith.truncf %172 : vector<2x32xf32> to vector<2x32xbf16>
    %174 = arith.index_cast %c3_i32 : i32 to index
    %c0_60 = arith.constant 0 : index
    %c0_61 = arith.constant 0 : index
    %175 = vector.load %arg6[%174, %c0_60, %c0_61] : memref<8x2x32xbf16, #tpu.memory_space<vmem>>, vector<1x2x32xbf16>
    %176 = vector.shape_cast %175 : vector<1x2x32xbf16> to vector<2x32xbf16>
    %177 = vector.shape_cast %173 : vector<2x32xbf16> to vector<1x2x32xbf16>
    tpu.vector_store %arg6[%174, %c0_60, %c0_61], %177 {strides = array<i32>} : memref<8x2x32xbf16, #tpu.memory_space<vmem>>, vector<1x2x32xbf16>,
    %c4_i32 = arith.constant 4 : i32
    %178 = arith.index_cast %c4_i32 : i32 to index
    %c0_62 = arith.constant 0 : index
    %c0_63 = arith.constant 0 : index
    %179 = vector.load %arg2[%178, %c0_62, %c0_63] : memref<8x2x128xbf16, #tpu.memory_space<vmem>>, vector<1x2x128xbf16>
    %180 = vector.shape_cast %179 : vector<1x2x128xbf16> to vector<2x128xbf16>
    %181 = arith.extf %180 : vector<2x128xbf16> to vector<2x128xf32>
    %182 = arith.truncf %172 : vector<2x32xf32> to vector<2x32xbf16>
    %cst_64 = arith.constant dense<0.000000e+00> : vector<2x128xf32>
    %183 = tpu.matmul %182, %3, %cst_64 {dimension_numbers = #tpu.dot_dimension_numbers<[1], [0], [0], [1], [0, 0, 1, 1], [], []>} : vector<2x32xbf16>, vector<32x128xbf16>, vector<2x128xf32> -> vector<2x128xf32>
    %184 = arith.addf %181, %183 : vector<2x128xf32>
    %185 = vector.extract_strided_slice %184 {offsets = [0, 0], sizes = [2, 32], strides = [1, 1]} : vector<2x128xf32> to vector<2x32xf32>
    %cst_65 = arith.constant 5.000000e-01 : f32
    %186 = vector.broadcast %cst_65 : f32 to vector<2x32xf32>
    %187 = arith.mulf %186, %185 : vector<2x32xf32>
    %188 = math.tanh %187 : vector<2x32xf32>
    %cst_66 = arith.constant 1.000000e+00 : f32
    %189 = vector.broadcast %cst_66 : f32 to vector<2x32xf32>
    %190 = arith.addf %188, %189 : vector<2x32xf32>
    %cst_67 = arith.constant 5.000000e-01 : f32
    %191 = vector.broadcast %cst_67 : f32 to vector<2x32xf32>
    %192 = arith.mulf %191, %190 : vector<2x32xf32>
    %193 = vector.extract_strided_slice %184 {offsets = [0, 32], sizes = [2, 32], strides = [1, 1]} : vector<2x128xf32> to vector<2x32xf32>
    %cst_68 = arith.constant 5.000000e-01 : f32
    %194 = vector.broadcast %cst_68 : f32 to vector<2x32xf32>
    %195 = arith.mulf %194, %193 : vector<2x32xf32>
    %196 = math.tanh %195 : vector<2x32xf32>
    %cst_69 = arith.constant 1.000000e+00 : f32
    %197 = vector.broadcast %cst_69 : f32 to vector<2x32xf32>
    %198 = arith.addf %196, %197 : vector<2x32xf32>
    %cst_70 = arith.constant 5.000000e-01 : f32
    %199 = vector.broadcast %cst_70 : f32 to vector<2x32xf32>
    %200 = arith.mulf %199, %198 : vector<2x32xf32>
    %201 = vector.extract_strided_slice %184 {offsets = [0, 64], sizes = [2, 32], strides = [1, 1]} : vector<2x128xf32> to vector<2x32xf32>
    %202 = math.tanh %201 : vector<2x32xf32>
    %203 = vector.extract_strided_slice %184 {offsets = [0, 96], sizes = [2, 32], strides = [1, 1]} : vector<2x128xf32> to vector<2x32xf32>
    %cst_71 = arith.constant 5.000000e-01 : f32
    %204 = vector.broadcast %cst_71 : f32 to vector<2x32xf32>
    %205 = arith.mulf %204, %203 : vector<2x32xf32>
    %206 = math.tanh %205 : vector<2x32xf32>
    %cst_72 = arith.constant 1.000000e+00 : f32
    %207 = vector.broadcast %cst_72 : f32 to vector<2x32xf32>
    %208 = arith.addf %206, %207 : vector<2x32xf32>
    %cst_73 = arith.constant 5.000000e-01 : f32
    %209 = vector.broadcast %cst_73 : f32 to vector<2x32xf32>
    %210 = arith.mulf %209, %208 : vector<2x32xf32>
    %211 = arith.mulf %200, %170 : vector<2x32xf32>
    %212 = arith.mulf %192, %202 : vector<2x32xf32>
    %213 = arith.addf %211, %212 : vector<2x32xf32>
    %214 = math.tanh %213 : vector<2x32xf32>
    %215 = arith.mulf %210, %214 : vector<2x32xf32>
    %216 = arith.truncf %215 : vector<2x32xf32> to vector<2x32xbf16>
    %217 = arith.index_cast %c4_i32 : i32 to index
    %c0_74 = arith.constant 0 : index
    %c0_75 = arith.constant 0 : index
    %218 = vector.load %arg6[%217, %c0_74, %c0_75] : memref<8x2x32xbf16, #tpu.memory_space<vmem>>, vector<1x2x32xbf16>
    %219 = vector.shape_cast %218 : vector<1x2x32xbf16> to vector<2x32xbf16>
    %220 = vector.shape_cast %216 : vector<2x32xbf16> to vector<1x2x32xbf16>
    tpu.vector_store %arg6[%217, %c0_74, %c0_75], %220 {strides = array<i32>} : memref<8x2x32xbf16, #tpu.memory_space<vmem>>, vector<1x2x32xbf16>,
    %c5_i32 = arith.constant 5 : i32
    %221 = arith.index_cast %c5_i32 : i32 to index
    %c0_76 = arith.constant 0 : index
    %c0_77 = arith.constant 0 : index
    %222 = vector.load %arg2[%221, %c0_76, %c0_77] : memref<8x2x128xbf16, #tpu.memory_space<vmem>>, vector<1x2x128xbf16>
    %223 = vector.shape_cast %222 : vector<1x2x128xbf16> to vector<2x128xbf16>
    %224 = arith.extf %223 : vector<2x128xbf16> to vector<2x128xf32>
    %225 = arith.truncf %215 : vector<2x32xf32> to vector<2x32xbf16>
    %cst_78 = arith.constant dense<0.000000e+00> : vector<2x128xf32>
    %226 = tpu.matmul %225, %3, %cst_78 {dimension_numbers = #tpu.dot_dimension_numbers<[1], [0], [0], [1], [0, 0, 1, 1], [], []>} : vector<2x32xbf16>, vector<32x128xbf16>, vector<2x128xf32> -> vector<2x128xf32>
    %227 = arith.addf %224, %226 : vector<2x128xf32>
    %228 = vector.extract_strided_slice %227 {offsets = [0, 0], sizes = [2, 32], strides = [1, 1]} : vector<2x128xf32> to vector<2x32xf32>
    %cst_79 = arith.constant 5.000000e-01 : f32
    %229 = vector.broadcast %cst_79 : f32 to vector<2x32xf32>
    %230 = arith.mulf %229, %228 : vector<2x32xf32>
    %231 = math.tanh %230 : vector<2x32xf32>
    %cst_80 = arith.constant 1.000000e+00 : f32
    %232 = vector.broadcast %cst_80 : f32 to vector<2x32xf32>
    %233 = arith.addf %231, %232 : vector<2x32xf32>
    %cst_81 = arith.constant 5.000000e-01 : f32
    %234 = vector.broadcast %cst_81 : f32 to vector<2x32xf32>
    %235 = arith.mulf %234, %233 : vector<2x32xf32>
    %236 = vector.extract_strided_slice %227 {offsets = [0, 32], sizes = [2, 32], strides = [1, 1]} : vector<2x128xf32> to vector<2x32xf32>
    %cst_82 = arith.constant 5.000000e-01 : f32
    %237 = vector.broadcast %cst_82 : f32 to vector<2x32xf32>
    %238 = arith.mulf %237, %236 : vector<2x32xf32>
    %239 = math.tanh %238 : vector<2x32xf32>
    %cst_83 = arith.constant 1.000000e+00 : f32
    %240 = vector.broadcast %cst_83 : f32 to vector<2x32xf32>
    %241 = arith.addf %239, %240 : vector<2x32xf32>
    %cst_84 = arith.constant 5.000000e-01 : f32
    %242 = vector.broadcast %cst_84 : f32 to vector<2x32xf32>
    %243 = arith.mulf %242, %241 : vector<2x32xf32>
    %244 = vector.extract_strided_slice %227 {offsets = [0, 64], sizes = [2, 32], strides = [1, 1]} : vector<2x128xf32> to vector<2x32xf32>
    %245 = math.tanh %244 : vector<2x32xf32>
    %246 = vector.extract_strided_slice %227 {offsets = [0, 96], sizes = [2, 32], strides = [1, 1]} : vector<2x128xf32> to vector<2x32xf32>
    %cst_85 = arith.constant 5.000000e-01 : f32
    %247 = vector.broadcast %cst_85 : f32 to vector<2x32xf32>
    %248 = arith.mulf %247, %246 : vector<2x32xf32>
    %249 = math.tanh %248 : vector<2x32xf32>
    %cst_86 = arith.constant 1.000000e+00 : f32
    %250 = vector.broadcast %cst_86 : f32 to vector<2x32xf32>
    %251 = arith.addf %249, %250 : vector<2x32xf32>
    %cst_87 = arith.constant 5.000000e-01 : f32
    %252 = vector.broadcast %cst_87 : f32 to vector<2x32xf32>
    %253 = arith.mulf %252, %251 : vector<2x32xf32>
    %254 = arith.mulf %243, %213 : vector<2x32xf32>
    %255 = arith.mulf %235, %245 : vector<2x32xf32>
    %256 = arith.addf %254, %255 : vector<2x32xf32>
    %257 = math.tanh %256 : vector<2x32xf32>
    %258 = arith.mulf %253, %257 : vector<2x32xf32>
    %259 = arith.truncf %258 : vector<2x32xf32> to vector<2x32xbf16>
    %260 = arith.index_cast %c5_i32 : i32 to index
    %c0_88 = arith.constant 0 : index
    %c0_89 = arith.constant 0 : index
    %261 = vector.load %arg6[%260, %c0_88, %c0_89] : memref<8x2x32xbf16, #tpu.memory_space<vmem>>, vector<1x2x32xbf16>
    %262 = vector.shape_cast %261 : vector<1x2x32xbf16> to vector<2x32xbf16>
    %263 = vector.shape_cast %259 : vector<2x32xbf16> to vector<1x2x32xbf16>
    tpu.vector_store %arg6[%260, %c0_88, %c0_89], %263 {strides = array<i32>} : memref<8x2x32xbf16, #tpu.memory_space<vmem>>, vector<1x2x32xbf16>,
    %c6_i32 = arith.constant 6 : i32
    %264 = arith.index_cast %c6_i32 : i32 to index
    %c0_90 = arith.constant 0 : index
    %c0_91 = arith.constant 0 : index
    %265 = vector.load %arg2[%264, %c0_90, %c0_91] : memref<8x2x128xbf16, #tpu.memory_space<vmem>>, vector<1x2x128xbf16>
    %266 = vector.shape_cast %265 : vector<1x2x128xbf16> to vector<2x128xbf16>
    %267 = arith.extf %266 : vector<2x128xbf16> to vector<2x128xf32>
    %268 = arith.truncf %258 : vector<2x32xf32> to vector<2x32xbf16>
    %cst_92 = arith.constant dense<0.000000e+00> : vector<2x128xf32>
    %269 = tpu.matmul %268, %3, %cst_92 {dimension_numbers = #tpu.dot_dimension_numbers<[1], [0], [0], [1], [0, 0, 1, 1], [], []>} : vector<2x32xbf16>, vector<32x128xbf16>, vector<2x128xf32> -> vector<2x128xf32>
    %270 = arith.addf %267, %269 : vector<2x128xf32>
    %271 = vector.extract_strided_slice %270 {offsets = [0, 0], sizes = [2, 32], strides = [1, 1]} : vector<2x128xf32> to vector<2x32xf32>
    %cst_93 = arith.constant 5.000000e-01 : f32
    %272 = vector.broadcast %cst_93 : f32 to vector<2x32xf32>
    %273 = arith.mulf %272, %271 : vector<2x32xf32>
    %274 = math.tanh %273 : vector<2x32xf32>
    %cst_94 = arith.constant 1.000000e+00 : f32
    %275 = vector.broadcast %cst_94 : f32 to vector<2x32xf32>
    %276 = arith.addf %274, %275 : vector<2x32xf32>
    %cst_95 = arith.constant 5.000000e-01 : f32
    %277 = vector.broadcast %cst_95 : f32 to vector<2x32xf32>
    %278 = arith.mulf %277, %276 : vector<2x32xf32>
    %279 = vector.extract_strided_slice %270 {offsets = [0, 32], sizes = [2, 32], strides = [1, 1]} : vector<2x128xf32> to vector<2x32xf32>
    %cst_96 = arith.constant 5.000000e-01 : f32
    %280 = vector.broadcast %cst_96 : f32 to vector<2x32xf32>
    %281 = arith.mulf %280, %279 : vector<2x32xf32>
    %282 = math.tanh %281 : vector<2x32xf32>
    %cst_97 = arith.constant 1.000000e+00 : f32
    %283 = vector.broadcast %cst_97 : f32 to vector<2x32xf32>
    %284 = arith.addf %282, %283 : vector<2x32xf32>
    %cst_98 = arith.constant 5.000000e-01 : f32
    %285 = vector.broadcast %cst_98 : f32 to vector<2x32xf32>
    %286 = arith.mulf %285, %284 : vector<2x32xf32>
    %287 = vector.extract_strided_slice %270 {offsets = [0, 64], sizes = [2, 32], strides = [1, 1]} : vector<2x128xf32> to vector<2x32xf32>
    %288 = math.tanh %287 : vector<2x32xf32>
    %289 = vector.extract_strided_slice %270 {offsets = [0, 96], sizes = [2, 32], strides = [1, 1]} : vector<2x128xf32> to vector<2x32xf32>
    %cst_99 = arith.constant 5.000000e-01 : f32
    %290 = vector.broadcast %cst_99 : f32 to vector<2x32xf32>
    %291 = arith.mulf %290, %289 : vector<2x32xf32>
    %292 = math.tanh %291 : vector<2x32xf32>
    %cst_100 = arith.constant 1.000000e+00 : f32
    %293 = vector.broadcast %cst_100 : f32 to vector<2x32xf32>
    %294 = arith.addf %292, %293 : vector<2x32xf32>
    %cst_101 = arith.constant 5.000000e-01 : f32
    %295 = vector.broadcast %cst_101 : f32 to vector<2x32xf32>
    %296 = arith.mulf %295, %294 : vector<2x32xf32>
    %297 = arith.mulf %286, %256 : vector<2x32xf32>
    %298 = arith.mulf %278, %288 : vector<2x32xf32>
    %299 = arith.addf %297, %298 : vector<2x32xf32>
    %300 = math.tanh %299 : vector<2x32xf32>
    %301 = arith.mulf %296, %300 : vector<2x32xf32>
    %302 = arith.truncf %301 : vector<2x32xf32> to vector<2x32xbf16>
    %303 = arith.index_cast %c6_i32 : i32 to index
    %c0_102 = arith.constant 0 : index
    %c0_103 = arith.constant 0 : index
    %304 = vector.load %arg6[%303, %c0_102, %c0_103] : memref<8x2x32xbf16, #tpu.memory_space<vmem>>, vector<1x2x32xbf16>
    %305 = vector.shape_cast %304 : vector<1x2x32xbf16> to vector<2x32xbf16>
    %306 = vector.shape_cast %302 : vector<2x32xbf16> to vector<1x2x32xbf16>
    tpu.vector_store %arg6[%303, %c0_102, %c0_103], %306 {strides = array<i32>} : memref<8x2x32xbf16, #tpu.memory_space<vmem>>, vector<1x2x32xbf16>,
    %c7_i32 = arith.constant 7 : i32
    %307 = arith.index_cast %c7_i32 : i32 to index
    %c0_104 = arith.constant 0 : index
    %c0_105 = arith.constant 0 : index
    %308 = vector.load %arg2[%307, %c0_104, %c0_105] : memref<8x2x128xbf16, #tpu.memory_space<vmem>>, vector<1x2x128xbf16>
    %309 = vector.shape_cast %308 : vector<1x2x128xbf16> to vector<2x128xbf16>
    %310 = arith.extf %309 : vector<2x128xbf16> to vector<2x128xf32>
    %311 = arith.truncf %301 : vector<2x32xf32> to vector<2x32xbf16>
    %cst_106 = arith.constant dense<0.000000e+00> : vector<2x128xf32>
    %312 = tpu.matmul %311, %3, %cst_106 {dimension_numbers = #tpu.dot_dimension_numbers<[1], [0], [0], [1], [0, 0, 1, 1], [], []>} : vector<2x32xbf16>, vector<32x128xbf16>, vector<2x128xf32> -> vector<2x128xf32>
    %313 = arith.addf %310, %312 : vector<2x128xf32>
    %314 = vector.extract_strided_slice %313 {offsets = [0, 0], sizes = [2, 32], strides = [1, 1]} : vector<2x128xf32> to vector<2x32xf32>
    %cst_107 = arith.constant 5.000000e-01 : f32
    %315 = vector.broadcast %cst_107 : f32 to vector<2x32xf32>
    %316 = arith.mulf %315, %314 : vector<2x32xf32>
    %317 = math.tanh %316 : vector<2x32xf32>
    %cst_108 = arith.constant 1.000000e+00 : f32
    %318 = vector.broadcast %cst_108 : f32 to vector<2x32xf32>
    %319 = arith.addf %317, %318 : vector<2x32xf32>
    %cst_109 = arith.constant 5.000000e-01 : f32
    %320 = vector.broadcast %cst_109 : f32 to vector<2x32xf32>
    %321 = arith.mulf %320, %319 : vector<2x32xf32>
    %322 = vector.extract_strided_slice %313 {offsets = [0, 32], sizes = [2, 32], strides = [1, 1]} : vector<2x128xf32> to vector<2x32xf32>
    %cst_110 = arith.constant 5.000000e-01 : f32
    %323 = vector.broadcast %cst_110 : f32 to vector<2x32xf32>
    %324 = arith.mulf %323, %322 : vector<2x32xf32>
    %325 = math.tanh %324 : vector<2x32xf32>
    %cst_111 = arith.constant 1.000000e+00 : f32
    %326 = vector.broadcast %cst_111 : f32 to vector<2x32xf32>
    %327 = arith.addf %325, %326 : vector<2x32xf32>
    %cst_112 = arith.constant 5.000000e-01 : f32
    %328 = vector.broadcast %cst_112 : f32 to vector<2x32xf32>
    %329 = arith.mulf %328, %327 : vector<2x32xf32>
    %330 = vector.extract_strided_slice %313 {offsets = [0, 64], sizes = [2, 32], strides = [1, 1]} : vector<2x128xf32> to vector<2x32xf32>
    %331 = math.tanh %330 : vector<2x32xf32>
    %332 = vector.extract_strided_slice %313 {offsets = [0, 96], sizes = [2, 32], strides = [1, 1]} : vector<2x128xf32> to vector<2x32xf32>
    %cst_113 = arith.constant 5.000000e-01 : f32
    %333 = vector.broadcast %cst_113 : f32 to vector<2x32xf32>
    %334 = arith.mulf %333, %332 : vector<2x32xf32>
    %335 = math.tanh %334 : vector<2x32xf32>
    %cst_114 = arith.constant 1.000000e+00 : f32
    %336 = vector.broadcast %cst_114 : f32 to vector<2x32xf32>
    %337 = arith.addf %335, %336 : vector<2x32xf32>
    %cst_115 = arith.constant 5.000000e-01 : f32
    %338 = vector.broadcast %cst_115 : f32 to vector<2x32xf32>
    %339 = arith.mulf %338, %337 : vector<2x32xf32>
    %340 = arith.mulf %329, %299 : vector<2x32xf32>
    %341 = arith.mulf %321, %331 : vector<2x32xf32>
    %342 = arith.addf %340, %341 : vector<2x32xf32>
    %343 = math.tanh %342 : vector<2x32xf32>
    %344 = arith.mulf %339, %343 : vector<2x32xf32>
    %345 = arith.truncf %344 : vector<2x32xf32> to vector<2x32xbf16>
    %346 = arith.index_cast %c7_i32 : i32 to index
    %c0_116 = arith.constant 0 : index
    %c0_117 = arith.constant 0 : index
    %347 = vector.load %arg6[%346, %c0_116, %c0_117] : memref<8x2x32xbf16, #tpu.memory_space<vmem>>, vector<1x2x32xbf16>
    %348 = vector.shape_cast %347 : vector<1x2x32xbf16> to vector<2x32xbf16>
    %349 = vector.shape_cast %345 : vector<2x32xbf16> to vector<1x2x32xbf16>
    tpu.vector_store %arg6[%346, %c0_116, %c0_117], %349 {strides = array<i32>} : memref<8x2x32xbf16, #tpu.memory_space<vmem>>, vector<1x2x32xbf16>,
    %c8_i32 = arith.constant 8 : i32
    %c0_118 = arith.constant 0 : index
    %c0_119 = arith.constant 0 : index
    %350 = vector.load %arg7[%c0_118, %c0_119] : memref<2x32xf32, #tpu.memory_space<vmem>>, vector<2x32xf32>
    tpu.vector_store %arg7[%c0_118, %c0_119], %344 {strides = array<i32>} : memref<2x32xf32, #tpu.memory_space<vmem>>, vector<2x32xf32>,
    %c0_120 = arith.constant 0 : index
    %c0_121 = arith.constant 0 : index
    %351 = vector.load %arg8[%c0_120, %c0_121] : memref<2x32xf32, #tpu.memory_space<vmem>>, vector<2x32xf32>
    tpu.vector_store %arg8[%c0_120, %c0_121], %342 {strides = array<i32>} : memref<2x32xf32, #tpu.memory_space<vmem>>, vector<2x32xf32>,
    return
  }
  func.func @transform_0(%arg0: i32, %arg1: i32) -> (i32, i32, i32) {
    %c0_i32 = arith.constant 0 : i32
    %c0_i32_0 = arith.constant 0 : i32
    return %arg1, %arg0, %c0_i32 : i32, i32, i32
  }
  func.func @transform_1(%arg0: i32, %arg1: i32) -> (i32, i32) {
    %c0_i32 = arith.constant 0 : i32
    %c0_i32_0 = arith.constant 0 : i32
    %c0_i32_1 = arith.constant 0 : i32
    return %c0_i32, %c0_i32_0 : i32, i32
  }
  func.func @transform_2(%arg0: i32, %arg1: i32) -> (i32, i32) {
    %c0_i32 = arith.constant 0 : i32
    %c0_i32_0 = arith.constant 0 : i32
    return %arg0, %c0_i32 : i32, i32
  }
  func.func @transform_3(%arg0: i32, %arg1: i32) -> (i32, i32) {
    %c0_i32 = arith.constant 0 : i32
    %c0_i32_0 = arith.constant 0 : i32
    return %arg0, %c0_i32 : i32, i32
  }
  func.func @transform_4(%arg0: i32, %arg1: i32) -> (i32, i32, i32) {
    %c0_i32 = arith.constant 0 : i32
    %c0_i32_0 = arith.constant 0 : i32
    return %arg1, %arg0, %c0_i32 : i32, i32, i32
  }
  func.func @transform_5(%arg0: i32, %arg1: i32) -> (i32, i32) {
    %c0_i32 = arith.constant 0 : i32
    %c0_i32_0 = arith.constant 0 : i32
    return %arg0, %c0_i32 : i32, i32
  }
  func.func @transform_6(%arg0: i32, %arg1: i32) -> (i32, i32) {
    %c0_i32 = arith.constant 0 : i32
    %c0_i32_0 = arith.constant 0 : i32
    return %arg0, %c0_i32 : i32, i32
  }
}

</mosaic_0001>

<llo_original>
// kernel: tpu_custom_call.1
$region0: #{tpu_custom_call.1}
  #allocation0 [shape = 'u32[]', space=smem, size = 0x4, offset = 0x4, fixed_abs, tag = 'smem constant byte address 0x4 - core index']
  #allocation1 [shape = 'u32[144,128]{1,0:T(1,128)}', space=vmem, size = 0x12000, scoped, tag = 'internal scratch']
  %s0 = inlined_call_operand.hbm [shape: bf16[8,2,128], index: 0, kind: input, shape index: {}]
  %s1 = inlined_call_operand.hbm [shape: bf16[32,128], index: 1, kind: input, shape index: {}]
  %s2 = inlined_call_operand.vmem [shape: f32[2,32], index: 2, kind: input, shape index: {}]
  %s3 = inlined_call_operand.vmem [shape: f32[2,32], index: 3, kind: input, shape index: {}]
  %s4 = inlined_call_operand.hbm [shape: bf16[8,2,32], index: 4, kind: output, shape index: {0}]
  %s5 = inlined_call_operand.hbm [shape: f32[2,32], index: 5, kind: output, shape index: {1}]
  %s6 = inlined_call_operand.hbm [shape: f32[2,32], index: 6, kind: output, shape index: {2}]
  %7 = xla_tuple %s4, %s5, %s6
  %s8 = sld [smem:[#allocation0]]
  $region54: #{tpu_custom_call.1} parent=0
    _
  %s10 = ssub.s32 1, %s8
  %s11 = scalar_select 0, %s10, %s8
  $region1: #{tpu_custom_call.1} parent=0
    #allocation2 [shape = 'u8[4096]{0}', space=vmem, size = 0x1000, scoped, tag = 'input window, operand 0, single buffered']
    #allocation3 [shape = 's32[1]{0}', space=sflag, size = 0x4, scoped, tag = 'scoped memory for tpu_custom_call.1']
    #allocation4 [shape = 's32[1]{0}', space=sflag, size = 0x4, scoped, tag = 'scoped memory for tpu_custom_call.1']
    #allocation5 [shape = 'u8[8192]{0}', space=vmem, size = 0x2000, scoped, tag = 'input window, operand 1, single buffered']
    #allocation6 [shape = 's32[1]{0}', space=sflag, size = 0x4, scoped, tag = 'scoped memory for tpu_custom_call.1']
    #allocation7 [shape = 'u8[4096]{0}', space=vmem, size = 0x1000, scoped, tag = 'output window, operand 0, single buffered']
    #allocation8 [shape = 'u8[1024]{0}', space=vmem, size = 0x400, scoped, tag = 'output window, operand 1, single buffered']
    #allocation9 [shape = 's32[1]{0}', space=sflag, size = 0x4, scoped, tag = 'scoped memory for tpu_custom_call.1']
    #allocation10 [shape = 'u8[1024]{0}', space=vmem, size = 0x400, scoped, tag = 'output window, operand 2, single buffered']
    %12 = vsyncpa [#allocation3], 0
    %13 = vsyncpa [#allocation6], 0
    %14 = vsyncpa [#allocation4], 0
    %15 = vsyncpa [#allocation9], 0
    // Predicated region
    $region2: #{tpu_custom_call.1} parent=1 // pred_check
      _
    $region3: #{tpu_custom_call.1} parent=1 // pred_check_branch
      %17 = sbr.rel (0) target = $region5
    $region4: #{tpu_custom_call.1} parent=1 // pred_region
      %s19 = ssub.s32 128, 128
      %20 = vsyncadd [#allocation3], %s19
      %s21 = sshll.u32 [#allocation2], 4
      %s22 = int_to_ptr.vmem [resolvable:$true] %s21
      %27 = dma.hbm_to_vmem [thread:$0]  %s0, 128, %s22, [#allocation3], 16, 16, 1
    $region5: #{tpu_custom_call.1} parent=1 // pred_fallthru
      _
    // Predicated region
    $region6: #{tpu_custom_call.1} parent=1 // pred_check
      _
    $region7: #{tpu_custom_call.1} parent=1 // pred_check_branch
      %29 = sbr.rel (0) target = $region9
    $region8: #{tpu_custom_call.1} parent=1 // pred_region
      %s31 = ssub.s32 256, 256
      %32 = vsyncadd [#allocation6], %s31
      %s33 = sshll.u32 [#allocation5], 4
      %s34 = int_to_ptr.vmem [resolvable:$true] %s33
      %39 = dma.hbm_to_vmem [thread:$0]  %s1, 256, %s34, [#allocation6], 64, 64, 4
    $region9: #{tpu_custom_call.1} parent=1 // pred_fallthru
      _
    // Predicated region
    $region10: #{tpu_custom_call.1} parent=1 // pred_check
      _
    $region11: #{tpu_custom_call.1} parent=1 // pred_check_branch
      %41 = sbr.rel (0) target = $region13
    $region12: #{tpu_custom_call.1} parent=1 // pred_region
      _
    $region13: #{tpu_custom_call.1} parent=1 // pred_fallthru
      _
    // Predicated region
    $region14: #{tpu_custom_call.1} parent=1 // pred_check
      _
    $region15: #{tpu_custom_call.1} parent=1 // pred_check_branch
      %43 = sbr.rel (0) target = $region17
    $region16: #{tpu_custom_call.1} parent=1 // pred_region
      _
    $region17: #{tpu_custom_call.1} parent=1 // pred_fallthru
      _
    // Predicated region
    $region18: #{tpu_custom_call.1} parent=1 // pred_check
      _
    $region19: #{tpu_custom_call.1} parent=1 // pred_check_branch
      %45 = sbr.rel (0) target = $region21
    $region20: #{tpu_custom_call.1} parent=1 // pred_region
      %46 = dma.done [#allocation3], 128
    $region21: #{tpu_custom_call.1} parent=1 // pred_fallthru
      _
    // Predicated region
    $region22: #{tpu_custom_call.1} parent=1 // pred_check
      _
    $region23: #{tpu_custom_call.1} parent=1 // pred_check_branch
      %48 = sbr.rel (0) target = $region25
    $region24: #{tpu_custom_call.1} parent=1 // pred_region
      %49 = dma.done [#allocation6], 256
    $region25: #{tpu_custom_call.1} parent=1 // pred_fallthru
      _
    %p51 = scmp.eq.s32.totalorder 0, 0
    // Predicated region
    $region26: #{tpu_custom_call.1} parent=1 // pred_check
      %p52 = pneg %p51
    $region27: #{tpu_custom_call.1} parent=1 // pred_check_branch
      %54 = sbr.rel (%p52) target = $region29
    $region28: #{tpu_custom_call.1} parent=1 // pred_region
      %v55 = vld [vmem:[%s2] sm:$0x3]
      %vm56 = vcmask 254976
      %57 = vst.msk [vmem:[#allocation8] sm:$0x3] %vm56, %v55
      %v58 = vld [vmem:[%s3] sm:$0x3]
      %59 = vst.msk [vmem:[#allocation10] sm:$0x3] %vm56, %v58
    $region29: #{tpu_custom_call.1} parent=1 // pred_fallthru
      _
    %v60 = vld [vmem:[#allocation5] sm:$0xf]
    %v61 = vld [vmem:[#allocation5 + $0x4] sm:$0xf]
    %v62 = vld [vmem:[#allocation5 + $0x8] sm:$0xf]
    %v63 = vld [vmem:[#allocation5 + $0xc] sm:$0xf]
    %v64 = vld [vmem:[#allocation8] sm:$0x3]
    %v65 = vld [vmem:[#allocation10] sm:$0x3]
    %v66 = vld [vmem:[#allocation2] sm:$0x1]
    %v67 = vunpack.c.l.bf16 %v66
    %v68 = vpack.c.bf16 %v64, %v64
    %v73 = vunpack.c.l.b16 %v60
    %v74 = vunpack.c.l.b16 %v61
    %v75 = vunpack.c.l.b16 %v62
    %v76 = vunpack.c.l.b16 %v63
    %v77 = vpack.c.b16 %v74, %v73
    %v78 = vpack.c.b16 %v76, %v75
    %vm81 = vcmask 261120
    %v83 = vsel %vm81, %v68, 0
    %85 = vmatprep.subr.bf16.mxu0 0
    %86 = vmatpush1.bf16.msra.mxu0 0
    %87 = vmatprep.subr.bf16.mxu0 0
    %88 = vmatpush1.bf16.msra.mxu0 0
    %89 = vmatprep.subr.bf16.mxu0 0
    %90 = vmatpush1.bf16.msra.mxu0 0
    %91 = vmatprep.subr.bf16.mxu0 0
    %92 = vmatpush1.bf16.msra.mxu0 0
    %93 = vmatprep.subr.bf16.mxu0 0
    %94 = vmatpush1.bf16.msra.mxu0 0
    %95 = vmatprep.subr.bf16.mxu0 0
    %96 = vmatpush1.bf16.msra.mxu0 0
    %97 = vmatprep.subr.bf16.mxu0 0
    %98 = vmatpush1.bf16.msra.mxu0 %v78
    %99 = vmatprep.subr.bf16.mxu0 0
    %100 = vmatpush1.bf16.msra.mxu0 %v77
    %101 = vmatprep.subr.bf16.mxu0 0
    %102 = vmatpush2.bf16.msra.mxu0 0
    %103 = vmatprep.subr.bf16.mxu0 0
    %104 = vmatpush2.bf16.msra.mxu0 0
    %105 = vmatprep.subr.bf16.mxu0 0
    %106 = vmatpush2.bf16.msra.mxu0 0
    %107 = vmatprep.subr.bf16.mxu0 0
    %108 = vmatpush2.bf16.msra.mxu0 0
    %109 = vmatprep.subr.bf16.mxu0 0
    %110 = vmatpush2.bf16.msra.mxu0 0
    %111 = vmatprep.subr.bf16.mxu0 0
    %112 = vmatpush2.bf16.msra.mxu0 0
    %113 = vmatprep.subr.bf16.mxu0 0
    %114 = vmatpush2.bf16.msra.mxu0 0
    %115 = vmatprep.subr.bf16.mxu0 0
    %116 = vmatpush2.bf16.msra.mxu0 0
    %117 = vmatprep.mubr.bf16.mxu0 0
    %118 = vmatmul.mubr.bf16.gmra.mxu0 %v83
    %v119 = vpop.f32.mrf.mxu0
    %v120 = vadd.f32 0.0, %v119
    %v121 = vpop.f32.mrf.mxu0
    %v122 = vpop.f32.mrf.mxu0
    %v123 = vpop.f32.mrf.mxu0
    %124 = vdwg.mxu0
    %v125 = vadd.f32 %v67, %v120
    %v126 = vmul.f32 %v125, 0.5
    %v127 = vtanh.pop %v126
    %v128 = vadd.f32 %v127, 1.0
    %v129 = vmul.f32 %v128, 0.5
    %v130 = vtanh.pop %v125
    %v133 = vunpack.c.l.s4 1983009808
    %v134 = vunpack.c.0.s8 %v133
    %v135 = vlaneseq
    %v136 = vshrl.u32 %v135, 7
    %v137 = vsub.s32 %v134, %v136
    %v138 = vrot.slane %v65, %v137
    %139 = vrot.lane.b32.xlu0 %v138, 32
    %v140 = vpop.permute.xlu0 %139
    %v142 = vmul.f32 %v129, %v140
    %144 = vrot.lane.b32.xlu0 %v130, 64
    %v145 = vpop.permute.xlu0 %144
    %v147 = vmul.f32 %v129, %v145
    %149 = vrot.lane.b32.xlu0 %v147, 32
    %v150 = vpop.permute.xlu0 %149
    %v152 = vadd.f32 %v142, %v150
    %v153 = vtanh.pop %v152
    %155 = vrot.lane.b32.xlu0 %v153, 64
    %v156 = vpop.permute.xlu0 %155
    %v158 = vmul.f32 %v129, %v156
    %v159 = vpack.c.bf16 %v158, %v158
    %v162 = vunpack.c.l.s4 1966171168
    %v163 = vunpack.c.0.s8 %v162
    %v164 = vlaneseq
    %v165 = vshrl.u32 %v164, 7
    %v166 = vsub.s32 %v163, %v165
    %v167 = vrot.slane %v159, %v166
    %v169 = vunpack.c.l.s4 1966171168
    %v170 = vunpack.c.0.s8 %v169
    %v171 = vlaneseq
    %v172 = vshrl.u32 %v171, 7
    %v173 = vsub.s32 %v170, %v172
    %v174 = vrot.slane %v167, %v173
    %175 = vrot.lane.b32.xlu0 %v174, 32
    %v176 = vpop.permute.xlu0 %175
    %vm178 = vcmask 253952
    %179 = vst.msk [vmem:[#allocation7] sm:$0x1] %vm178, %v176
    %s180 = scalar_lea.vmem [#allocation2], 1
    %v181 = vld [vmem:[%s180] sm:$0x1]
    %v182 = vunpack.c.l.bf16 %v181
    %183 = vrot.lane.b32.xlu0 %v159, 32
    %v184 = vpop.permute.xlu0 %183
    %v186 = vsel %vm81, %v184, 0
    %188 = vmatprep.subr.bf16.mxu0 0
    %189 = vmatpush1.bf16.msra.mxu0 0
    %190 = vmatprep.subr.bf16.mxu0 0
    %191 = vmatpush1.bf16.msra.mxu0 0
    %192 = vmatprep.subr.bf16.mxu0 0
    %193 = vmatpush1.bf16.msra.mxu0 0
    %194 = vmatprep.subr.bf16.mxu0 0
    %195 = vmatpush1.bf16.msra.mxu0 0
    %196 = vmatprep.subr.bf16.mxu0 0
    %197 = vmatpush1.bf16.msra.mxu0 0
    %198 = vmatprep.subr.bf16.mxu0 0
    %199 = vmatpush1.bf16.msra.mxu0 0
    %200 = vmatprep.subr.bf16.mxu0 0
    %201 = vmatpush1.bf16.msra.mxu0 %v78
    %202 = vmatprep.subr.bf16.mxu0 0
    %203 = vmatpush1.bf16.msra.mxu0 %v77
    %204 = vmatprep.subr.bf16.mxu0 0
    %205 = vmatpush2.bf16.msra.mxu0 0
    %206 = vmatprep.subr.bf16.mxu0 0
    %207 = vmatpush2.bf16.msra.mxu0 0
    %208 = vmatprep.subr.bf16.mxu0 0
    %209 = vmatpush2.bf16.msra.mxu0 0
    %210 = vmatprep.subr.bf16.mxu0 0
    %211 = vmatpush2.bf16.msra.mxu0 0
    %212 = vmatprep.subr.bf16.mxu0 0
    %213 = vmatpush2.bf16.msra.mxu0 0
    %214 = vmatprep.subr.bf16.mxu0 0
    %215 = vmatpush2.bf16.msra.mxu0 0
    %216 = vmatprep.subr.bf16.mxu0 0
    %217 = vmatpush2.bf16.msra.mxu0 0
    %218 = vmatprep.subr.bf16.mxu0 0
    %219 = vmatpush2.bf16.msra.mxu0 0
    %220 = vmatprep.mubr.bf16.mxu0 0
    %221 = vmatmul.mubr.bf16.gmra.mxu0 %v186
    %v222 = vpop.f32.mrf.mxu0
    %v223 = vadd.f32 0.0, %v222
    %v224 = vpop.f32.mrf.mxu0
    %v225 = vpop.f32.mrf.mxu0
    %v226 = vpop.f32.mrf.mxu0
    %227 = vdwg.mxu0
    %v228 = vadd.f32 %v182, %v223
    %v229 = vmul.f32 %v228, 0.5
    %v230 = vtanh.pop %v229
    %v231 = vadd.f32 %v230, 1.0
    %v232 = vmul.f32 %v231, 0.5
    %v233 = vtanh.pop %v228
    %v234 = vmul.f32 %v232, %v152
    %236 = vrot.lane.b32.xlu0 %v233, 64
    %v237 = vpop.permute.xlu0 %236
    %v239 = vmul.f32 %v232, %v237
    %241 = vrot.lane.b32.xlu0 %v239, 32
    %v242 = vpop.permute.xlu0 %241
    %v244 = vadd.f32 %v234, %v242
    %v245 = vtanh.pop %v244
    %247 = vrot.lane.b32.xlu0 %v245, 64
    %v248 = vpop.permute.xlu0 %247
    %v250 = vmul.f32 %v232, %v248
    %v251 = vpack.c.bf16 %v250, %v250
    %v254 = vunpack.c.l.s4 1966171168
    %v255 = vunpack.c.0.s8 %v254
    %v256 = vlaneseq
    %v257 = vshrl.u32 %v256, 7
    %v258 = vsub.s32 %v255, %v257
    %v259 = vrot.slane %v251, %v258
    %v261 = vunpack.c.l.s4 1966171168
    %v262 = vunpack.c.0.s8 %v261
    %v263 = vlaneseq
    %v264 = vshrl.u32 %v263, 7
    %v265 = vsub.s32 %v262, %v264
    %v266 = vrot.slane %v259, %v265
    %267 = vrot.lane.b32.xlu0 %v266, 32
    %v268 = vpop.permute.xlu0 %267
    %s270 = scalar_lea.vmem [#allocation7], 1
    %271 = vst.msk [vmem:[%s270] sm:$0x1] %vm178, %v268
    %s272 = scalar_lea.vmem [#allocation2], 2
    %v273 = vld [vmem:[%s272] sm:$0x1]
    %v274 = vunpack.c.l.bf16 %v273
    %275 = vrot.lane.b32.xlu0 %v251, 32
    %v276 = vpop.permute.xlu0 %275
    %v278 = vsel %vm81, %v276, 0
    %280 = vmatprep.subr.bf16.mxu0 0
    %281 = vmatpush1.bf16.msra.mxu0 0
    %282 = vmatprep.subr.bf16.mxu0 0
    %283 = vmatpush1.bf16.msra.mxu0 0
    %284 = vmatprep.subr.bf16.mxu0 0
    %285 = vmatpush1.bf16.msra.mxu0 0
    %286 = vmatprep.subr.bf16.mxu0 0
    %287 = vmatpush1.bf16.msra.mxu0 0
    %288 = vmatprep.subr.bf16.mxu0 0
    %289 = vmatpush1.bf16.msra.mxu0 0
    %290 = vmatprep.subr.bf16.mxu0 0
    %291 = vmatpush1.bf16.msra.mxu0 0
    %292 = vmatprep.subr.bf16.mxu0 0
    %293 = vmatpush1.bf16.msra.mxu0 %v78
    %294 = vmatprep.subr.bf16.mxu0 0
    %295 = vmatpush1.bf16.msra.mxu0 %v77
    %296 = vmatprep.subr.bf16.mxu0 0
    %297 = vmatpush2.bf16.msra.mxu0 0
    %298 = vmatprep.subr.bf16.mxu0 0
    %299 = vmatpush2.bf16.msra.mxu0 0
    %300 = vmatprep.subr.bf16.mxu0 0
    %301 = vmatpush2.bf16.msra.mxu0 0
    %302 = vmatprep.subr.bf16.mxu0 0
    %303 = vmatpush2.bf16.msra.mxu0 0
    %304 = vmatprep.subr.bf16.mxu0 0
    %305 = vmatpush2.bf16.msra.mxu0 0
    %306 = vmatprep.subr.bf16.mxu0 0
    %307 = vmatpush2.bf16.msra.mxu0 0
    %308 = vmatprep.subr.bf16.mxu0 0
    %309 = vmatpush2.bf16.msra.mxu0 0
    %310 = vmatprep.subr.bf16.mxu0 0
    %311 = vmatpush2.bf16.msra.mxu0 0
    %312 = vmatprep.mubr.bf16.mxu0 0
    %313 = vmatmul.mubr.bf16.gmra.mxu0 %v278
    %v314 = vpop.f32.mrf.mxu0
    %v315 = vadd.f32 0.0, %v314
    %v316 = vpop.f32.mrf.mxu0
    %v317 = vpop.f32.mrf.mxu0
    %v318 = vpop.f32.mrf.mxu0
    %319 = vdwg.mxu0
    %v320 = vadd.f32 %v274, %v315
    %v321 = vmul.f32 %v320, 0.5
    %v322 = vtanh.pop %v321
    %v323 = vadd.f32 %v322, 1.0
    %v324 = vmul.f32 %v323, 0.5
    %v325 = vtanh.pop %v320
    %v326 = vmul.f32 %v324, %v244
    %328 = vrot.lane.b32.xlu0 %v325, 64
    %v329 = vpop.permute.xlu0 %328
    %v331 = vmul.f32 %v324, %v329
    %333 = vrot.lane.b32.xlu0 %v331, 32
    %v334 = vpop.permute.xlu0 %333
    %v336 = vadd.f32 %v326, %v334
    %v337 = vtanh.pop %v336
    %339 = vrot.lane.b32.xlu0 %v337, 64
    %v340 = vpop.permute.xlu0 %339
    %v342 = vmul.f32 %v324, %v340
    %v343 = vpack.c.bf16 %v342, %v342
    %v346 = vunpack.c.l.s4 1966171168
    %v347 = vunpack.c.0.s8 %v346
    %v348 = vlaneseq
    %v349 = vshrl.u32 %v348, 7
    %v350 = vsub.s32 %v347, %v349
    %v351 = vrot.slane %v343, %v350
    %v353 = vunpack.c.l.s4 1966171168
    %v354 = vunpack.c.0.s8 %v353
    %v355 = vlaneseq
    %v356 = vshrl.u32 %v355, 7
    %v357 = vsub.s32 %v354, %v356
    %v358 = vrot.slane %v351, %v357
    %359 = vrot.lane.b32.xlu0 %v358, 32
    %v360 = vpop.permute.xlu0 %359
    %s362 = scalar_lea.vmem [#allocation7], 2
    %363 = vst.msk [vmem:[%s362] sm:$0x1] %vm178, %v360
    %s364 = scalar_lea.vmem [#allocation2], 3
    %v365 = vld [vmem:[%s364] sm:$0x1]
    %v366 = vunpack.c.l.bf16 %v365
    %367 = vrot.lane.b32.xlu0 %v343, 32
    %v368 = vpop.permute.xlu0 %367
    %v370 = vsel %vm81, %v368, 0
    %372 = vmatprep.subr.bf16.mxu0 0
    %373 = vmatpush1.bf16.msra.mxu0 0
    %374 = vmatprep.subr.bf16.mxu0 0
    %375 = vmatpush1.bf16.msra.mxu0 0
    %376 = vmatprep.subr.bf16.mxu0 0
    %377 = vmatpush1.bf16.msra.mxu0 0
    %378 = vmatprep.subr.bf16.mxu0 0
    %379 = vmatpush1.bf16.msra.mxu0 0
    %380 = vmatprep.subr.bf16.mxu0 0
    %381 = vmatpush1.bf16.msra.mxu0 0
    %382 = vmatprep.subr.bf16.mxu0 0
    %383 = vmatpush1.bf16.msra.mxu0 0
    %384 = vmatprep.subr.bf16.mxu0 0
    %385 = vmatpush1.bf16.msra.mxu0 %v78
    %386 = vmatprep.subr.bf16.mxu0 0
    %387 = vmatpush1.bf16.msra.mxu0 %v77
    %388 = vmatprep.subr.bf16.mxu0 0
    %389 = vmatpush2.bf16.msra.mxu0 0
    %390 = vmatprep.subr.bf16.mxu0 0
    %391 = vmatpush2.bf16.msra.mxu0 0
    %392 = vmatprep.subr.bf16.mxu0 0
    %393 = vmatpush2.bf16.msra.mxu0 0
    %394 = vmatprep.subr.bf16.mxu0 0
    %395 = vmatpush2.bf16.msra.mxu0 0
    %396 = vmatprep.subr.bf16.mxu0 0
    %397 = vmatpush2.bf16.msra.mxu0 0
    %398 = vmatprep.subr.bf16.mxu0 0
    %399 = vmatpush2.bf16.msra.mxu0 0
    %400 = vmatprep.subr.bf16.mxu0 0
    %401 = vmatpush2.bf16.msra.mxu0 0
    %402 = vmatprep.subr.bf16.mxu0 0
    %403 = vmatpush2.bf16.msra.mxu0 0
    %404 = vmatprep.mubr.bf16.mxu0 0
    %405 = vmatmul.mubr.bf16.gmra.mxu0 %v370
    %v406 = vpop.f32.mrf.mxu0
    %v407 = vadd.f32 0.0, %v406
    %v408 = vpop.f32.mrf.mxu0
    %v409 = vpop.f32.mrf.mxu0
    %v410 = vpop.f32.mrf.mxu0
    %411 = vdwg.mxu0
    %v412 = vadd.f32 %v366, %v407
    %v413 = vmul.f32 %v412, 0.5
    %v414 = vtanh.pop %v413
    %v415 = vadd.f32 %v414, 1.0
    %v416 = vmul.f32 %v415, 0.5
    %v417 = vtanh.pop %v412
    %v418 = vmul.f32 %v416, %v336
    %420 = vrot.lane.b32.xlu0 %v417, 64
    %v421 = vpop.permute.xlu0 %420
    %v423 = vmul.f32 %v416, %v421
    %425 = vrot.lane.b32.xlu0 %v423, 32
    %v426 = vpop.permute.xlu0 %425
    %v428 = vadd.f32 %v418, %v426
    %v429 = vtanh.pop %v428
    %431 = vrot.lane.b32.xlu0 %v429, 64
    %v432 = vpop.permute.xlu0 %431
    %v434 = vmul.f32 %v416, %v432
    %v435 = vpack.c.bf16 %v434, %v434
    %v438 = vunpack.c.l.s4 1966171168
    %v439 = vunpack.c.0.s8 %v438
    %v440 = vlaneseq
    %v441 = vshrl.u32 %v440, 7
    %v442 = vsub.s32 %v439, %v441
    %v443 = vrot.slane %v435, %v442
    %v445 = vunpack.c.l.s4 1966171168
    %v446 = vunpack.c.0.s8 %v445
    %v447 = vlaneseq
    %v448 = vshrl.u32 %v447, 7
    %v449 = vsub.s32 %v446, %v448
    %v450 = vrot.slane %v443, %v449
    %451 = vrot.lane.b32.xlu0 %v450, 32
    %v452 = vpop.permute.xlu0 %451
    %s454 = scalar_lea.vmem [#allocation7], 3
    %455 = vst.msk [vmem:[%s454] sm:$0x1] %vm178, %v452
    %s456 = scalar_lea.vmem [#allocation2], 4
    %v457 = vld [vmem:[%s456] sm:$0x1]
    %v458 = vunpack.c.l.bf16 %v457
    %459 = vrot.lane.b32.xlu0 %v435, 32
    %v460 = vpop.permute.xlu0 %459
    %v462 = vsel %vm81, %v460, 0
    %464 = vmatprep.subr.bf16.mxu0 0
    %465 = vmatpush1.bf16.msra.mxu0 0
    %466 = vmatprep.subr.bf16.mxu0 0
    %467 = vmatpush1.bf16.msra.mxu0 0
    %468 = vmatprep.subr.bf16.mxu0 0
    %469 = vmatpush1.bf16.msra.mxu0 0
    %470 = vmatprep.subr.bf16.mxu0 0
    %471 = vmatpush1.bf16.msra.mxu0 0
    %472 = vmatprep.subr.bf16.mxu0 0
    %473 = vmatpush1.bf16.msra.mxu0 0
    %474 = vmatprep.subr.bf16.mxu0 0
    %475 = vmatpush1.bf16.msra.mxu0 0
    %476 = vmatprep.subr.bf16.mxu0 0
    %477 = vmatpush1.bf16.msra.mxu0 %v78
    %478 = vmatprep.subr.bf16.mxu0 0
    %479 = vmatpush1.bf16.msra.mxu0 %v77
    %480 = vmatprep.subr.bf16.mxu0 0
    %481 = vmatpush2.bf16.msra.mxu0 0
    %482 = vmatprep.subr.bf16.mxu0 0
    %483 = vmatpush2.bf16.msra.mxu0 0
    %484 = vmatprep.subr.bf16.mxu0 0
    %485 = vmatpush2.bf16.msra.mxu0 0
    %486 = vmatprep.subr.bf16.mxu0 0
    %487 = vmatpush2.bf16.msra.mxu0 0
    %488 = vmatprep.subr.bf16.mxu0 0
    %489 = vmatpush2.bf16.msra.mxu0 0
    %490 = vmatprep.subr.bf16.mxu0 0
    %491 = vmatpush2.bf16.msra.mxu0 0
    %492 = vmatprep.subr.bf16.mxu0 0
    %493 = vmatpush2.bf16.msra.mxu0 0
    %494 = vmatprep.subr.bf16.mxu0 0
    %495 = vmatpush2.bf16.msra.mxu0 0
    %496 = vmatprep.mubr.bf16.mxu0 0
    %497 = vmatmul.mubr.bf16.gmra.mxu0 %v462
    %v498 = vpop.f32.mrf.mxu0
    %v499 = vadd.f32 0.0, %v498
    %v500 = vpop.f32.mrf.mxu0
    %v501 = vpop.f32.mrf.mxu0
    %v502 = vpop.f32.mrf.mxu0
    %503 = vdwg.mxu0
    %v504 = vadd.f32 %v458, %v499
    %v505 = vmul.f32 %v504, 0.5
    %v506 = vtanh.pop %v505
    %v507 = vadd.f32 %v506, 1.0
    %v508 = vmul.f32 %v507, 0.5
    %v509 = vtanh.pop %v504
    %v510 = vmul.f32 %v508, %v428
    %512 = vrot.lane.b32.xlu0 %v509, 64
    %v513 = vpop.permute.xlu0 %512
    %v515 = vmul.f32 %v508, %v513
    %517 = vrot.lane.b32.xlu0 %v515, 32
    %v518 = vpop.permute.xlu0 %517
    %v520 = vadd.f32 %v510, %v518
    %v521 = vtanh.pop %v520
    %523 = vrot.lane.b32.xlu0 %v521, 64
    %v524 = vpop.permute.xlu0 %523
    %v526 = vmul.f32 %v508, %v524
    %v527 = vpack.c.bf16 %v526, %v526
    %v530 = vunpack.c.l.s4 1966171168
    %v531 = vunpack.c.0.s8 %v530
    %v532 = vlaneseq
    %v533 = vshrl.u32 %v532, 7
    %v534 = vsub.s32 %v531, %v533
    %v535 = vrot.slane %v527, %v534
    %v537 = vunpack.c.l.s4 1966171168
    %v538 = vunpack.c.0.s8 %v537
    %v539 = vlaneseq
    %v540 = vshrl.u32 %v539, 7
    %v541 = vsub.s32 %v538, %v540
    %v542 = vrot.slane %v535, %v541
    %543 = vrot.lane.b32.xlu0 %v542, 32
    %v544 = vpop.permute.xlu0 %543
    %s546 = scalar_lea.vmem [#allocation7], 4
    %547 = vst.msk [vmem:[%s546] sm:$0x1] %vm178, %v544
    %s548 = scalar_lea.vmem [#allocation2], 5
    %v549 = vld [vmem:[%s548] sm:$0x1]
    %v550 = vunpack.c.l.bf16 %v549
    %551 = vrot.lane.b32.xlu0 %v527, 32
    %v552 = vpop.permute.xlu0 %551
    %v554 = vsel %vm81, %v552, 0
    %556 = vmatprep.subr.bf16.mxu0 0
    %557 = vmatpush1.bf16.msra.mxu0 0
    %558 = vmatprep.subr.bf16.mxu0 0
    %559 = vmatpush1.bf16.msra.mxu0 0
    %560 = vmatprep.subr.bf16.mxu0 0
    %561 = vmatpush1.bf16.msra.mxu0 0
    %562 = vmatprep.subr.bf16.mxu0 0
    %563 = vmatpush1.bf16.msra.mxu0 0
    %564 = vmatprep.subr.bf16.mxu0 0
    %565 = vmatpush1.bf16.msra.mxu0 0
    %566 = vmatprep.subr.bf16.mxu0 0
    %567 = vmatpush1.bf16.msra.mxu0 0
    %568 = vmatprep.subr.bf16.mxu0 0
    %569 = vmatpush1.bf16.msra.mxu0 %v78
    %570 = vmatprep.subr.bf16.mxu0 0
    %571 = vmatpush1.bf16.msra.mxu0 %v77
    %572 = vmatprep.subr.bf16.mxu0 0
    %573 = vmatpush2.bf16.msra.mxu0 0
    %574 = vmatprep.subr.bf16.mxu0 0
    %575 = vmatpush2.bf16.msra.mxu0 0
    %576 = vmatprep.subr.bf16.mxu0 0
    %577 = vmatpush2.bf16.msra.mxu0 0
    %578 = vmatprep.subr.bf16.mxu0 0
    %579 = vmatpush2.bf16.msra.mxu0 0
    %580 = vmatprep.subr.bf16.mxu0 0
    %581 = vmatpush2.bf16.msra.mxu0 0
    %582 = vmatprep.subr.bf16.mxu0 0
    %583 = vmatpush2.bf16.msra.mxu0 0
    %584 = vmatprep.subr.bf16.mxu0 0
    %585 = vmatpush2.bf16.msra.mxu0 0
    %586 = vmatprep.subr.bf16.mxu0 0
    %587 = vmatpush2.bf16.msra.mxu0 0
    %588 = vmatprep.mubr.bf16.mxu0 0
    %589 = vmatmul.mubr.bf16.gmra.mxu0 %v554
    %v590 = vpop.f32.mrf.mxu0
    %v591 = vadd.f32 0.0, %v590
    %v592 = vpop.f32.mrf.mxu0
    %v593 = vpop.f32.mrf.mxu0
    %v594 = vpop.f32.mrf.mxu0
    %595 = vdwg.mxu0
    %v596 = vadd.f32 %v550, %v591
    %v597 = vmul.f32 %v596, 0.5
    %v598 = vtanh.pop %v597
    %v599 = vadd.f32 %v598, 1.0
    %v600 = vmul.f32 %v599, 0.5
    %v601 = vtanh.pop %v596
    %v602 = vmul.f32 %v600, %v520
    %604 = vrot.lane.b32.xlu0 %v601, 64
    %v605 = vpop.permute.xlu0 %604
    %v607 = vmul.f32 %v600, %v605
    %609 = vrot.lane.b32.xlu0 %v607, 32
    %v610 = vpop.permute.xlu0 %609
    %v612 = vadd.f32 %v602, %v610
    %v613 = vtanh.pop %v612
    %615 = vrot.lane.b32.xlu0 %v613, 64
    %v616 = vpop.permute.xlu0 %615
    %v618 = vmul.f32 %v600, %v616
    %v619 = vpack.c.bf16 %v618, %v618
    %v622 = vunpack.c.l.s4 1966171168
    %v623 = vunpack.c.0.s8 %v622
    %v624 = vlaneseq
    %v625 = vshrl.u32 %v624, 7
    %v626 = vsub.s32 %v623, %v625
    %v627 = vrot.slane %v619, %v626
    %v629 = vunpack.c.l.s4 1966171168
    %v630 = vunpack.c.0.s8 %v629
    %v631 = vlaneseq
    %v632 = vshrl.u32 %v631, 7
    %v633 = vsub.s32 %v630, %v632
    %v634 = vrot.slane %v627, %v633
    %635 = vrot.lane.b32.xlu0 %v634, 32
    %v636 = vpop.permute.xlu0 %635
    %s638 = scalar_lea.vmem [#allocation7], 5
    %639 = vst.msk [vmem:[%s638] sm:$0x1] %vm178, %v636
    %s640 = scalar_lea.vmem [#allocation2], 6
    %v641 = vld [vmem:[%s640] sm:$0x1]
    %v642 = vunpack.c.l.bf16 %v641
    %643 = vrot.lane.b32.xlu0 %v619, 32
    %v644 = vpop.permute.xlu0 %643
    %v646 = vsel %vm81, %v644, 0
    %648 = vmatprep.subr.bf16.mxu0 0
    %649 = vmatpush1.bf16.msra.mxu0 0
    %650 = vmatprep.subr.bf16.mxu0 0
    %651 = vmatpush1.bf16.msra.mxu0 0
    %652 = vmatprep.subr.bf16.mxu0 0
    %653 = vmatpush1.bf16.msra.mxu0 0
    %654 = vmatprep.subr.bf16.mxu0 0
    %655 = vmatpush1.bf16.msra.mxu0 0
    %656 = vmatprep.subr.bf16.mxu0 0
    %657 = vmatpush1.bf16.msra.mxu0 0
    %658 = vmatprep.subr.bf16.mxu0 0
    %659 = vmatpush1.bf16.msra.mxu0 0
    %660 = vmatprep.subr.bf16.mxu0 0
    %661 = vmatpush1.bf16.msra.mxu0 %v78
    %662 = vmatprep.subr.bf16.mxu0 0
    %663 = vmatpush1.bf16.msra.mxu0 %v77
    %664 = vmatprep.subr.bf16.mxu0 0
    %665 = vmatpush2.bf16.msra.mxu0 0
    %666 = vmatprep.subr.bf16.mxu0 0
    %667 = vmatpush2.bf16.msra.mxu0 0
    %668 = vmatprep.subr.bf16.mxu0 0
    %669 = vmatpush2.bf16.msra.mxu0 0
    %670 = vmatprep.subr.bf16.mxu0 0
    %671 = vmatpush2.bf16.msra.mxu0 0
    %672 = vmatprep.subr.bf16.mxu0 0
    %673 = vmatpush2.bf16.msra.mxu0 0
    %674 = vmatprep.subr.bf16.mxu0 0
    %675 = vmatpush2.bf16.msra.mxu0 0
    %676 = vmatprep.subr.bf16.mxu0 0
    %677 = vmatpush2.bf16.msra.mxu0 0
    %678 = vmatprep.subr.bf16.mxu0 0
    %679 = vmatpush2.bf16.msra.mxu0 0
    %680 = vmatprep.mubr.bf16.mxu0 0
    %681 = vmatmul.mubr.bf16.gmra.mxu0 %v646
    %v682 = vpop.f32.mrf.mxu0
    %v683 = vadd.f32 0.0, %v682
    %v684 = vpop.f32.mrf.mxu0
    %v685 = vpop.f32.mrf.mxu0
    %v686 = vpop.f32.mrf.mxu0
    %687 = vdwg.mxu0
    %v688 = vadd.f32 %v642, %v683
    %v689 = vmul.f32 %v688, 0.5
    %v690 = vtanh.pop %v689
    %v691 = vadd.f32 %v690, 1.0
    %v692 = vmul.f32 %v691, 0.5
    %v693 = vtanh.pop %v688
    %v694 = vmul.f32 %v692, %v612
    %696 = vrot.lane.b32.xlu0 %v693, 64
    %v697 = vpop.permute.xlu0 %696
    %v699 = vmul.f32 %v692, %v697
    %701 = vrot.lane.b32.xlu0 %v699, 32
    %v702 = vpop.permute.xlu0 %701
    %v704 = vadd.f32 %v694, %v702
    %v705 = vtanh.pop %v704
    %707 = vrot.lane.b32.xlu0 %v705, 64
    %v708 = vpop.permute.xlu0 %707
    %v710 = vmul.f32 %v692, %v708
    %v711 = vpack.c.bf16 %v710, %v710
    %v714 = vunpack.c.l.s4 1966171168
    %v715 = vunpack.c.0.s8 %v714
    %v716 = vlaneseq
    %v717 = vshrl.u32 %v716, 7
    %v718 = vsub.s32 %v715, %v717
    %v719 = vrot.slane %v711, %v718
    %v721 = vunpack.c.l.s4 1966171168
    %v722 = vunpack.c.0.s8 %v721
    %v723 = vlaneseq
    %v724 = vshrl.u32 %v723, 7
    %v725 = vsub.s32 %v722, %v724
    %v726 = vrot.slane %v719, %v725
    %727 = vrot.lane.b32.xlu0 %v726, 32
    %v728 = vpop.permute.xlu0 %727
    %s730 = scalar_lea.vmem [#allocation7], 6
    %731 = vst.msk [vmem:[%s730] sm:$0x1] %vm178, %v728
    %s732 = scalar_lea.vmem [#allocation2], 7
    %v733 = vld [vmem:[%s732] sm:$0x1]
    %v734 = vunpack.c.l.bf16 %v733
    %735 = vrot.lane.b32.xlu0 %v711, 32
    %v736 = vpop.permute.xlu0 %735
    %v738 = vsel %vm81, %v736, 0
    %740 = vmatprep.subr.bf16.mxu0 0
    %741 = vmatpush1.bf16.msra.mxu0 0
    %742 = vmatprep.subr.bf16.mxu0 0
    %743 = vmatpush1.bf16.msra.mxu0 0
    %744 = vmatprep.subr.bf16.mxu0 0
    %745 = vmatpush1.bf16.msra.mxu0 0
    %746 = vmatprep.subr.bf16.mxu0 0
    %747 = vmatpush1.bf16.msra.mxu0 0
    %748 = vmatprep.subr.bf16.mxu0 0
    %749 = vmatpush1.bf16.msra.mxu0 0
    %750 = vmatprep.subr.bf16.mxu0 0
    %751 = vmatpush1.bf16.msra.mxu0 0
    %752 = vmatprep.subr.bf16.mxu0 0
    %753 = vmatpush1.bf16.msra.mxu0 %v78
    %754 = vmatprep.subr.bf16.mxu0 0
    %755 = vmatpush1.bf16.msra.mxu0 %v77
    %756 = vmatprep.subr.bf16.mxu0 0
    %757 = vmatpush2.bf16.msra.mxu0 0
    %758 = vmatprep.subr.bf16.mxu0 0
    %759 = vmatpush2.bf16.msra.mxu0 0
    %760 = vmatprep.subr.bf16.mxu0 0
    %761 = vmatpush2.bf16.msra.mxu0 0
    %762 = vmatprep.subr.bf16.mxu0 0
    %763 = vmatpush2.bf16.msra.mxu0 0
    %764 = vmatprep.subr.bf16.mxu0 0
    %765 = vmatpush2.bf16.msra.mxu0 0
    %766 = vmatprep.subr.bf16.mxu0 0
    %767 = vmatpush2.bf16.msra.mxu0 0
    %768 = vmatprep.subr.bf16.mxu0 0
    %769 = vmatpush2.bf16.msra.mxu0 0
    %770 = vmatprep.subr.bf16.mxu0 0
    %771 = vmatpush2.bf16.msra.mxu0 0
    %772 = vmatprep.mubr.bf16.mxu0 0
    %773 = vmatmul.mubr.bf16.gmra.mxu0 %v738
    %v774 = vpop.f32.mrf.mxu0
    %v775 = vadd.f32 0.0, %v774
    %v776 = vpop.f32.mrf.mxu0
    %v777 = vpop.f32.mrf.mxu0
    %v778 = vpop.f32.mrf.mxu0
    %779 = vdwg.mxu0
    %v780 = vadd.f32 %v734, %v775
    %v781 = vmul.f32 %v780, 0.5
    %v782 = vtanh.pop %v781
    %v783 = vadd.f32 %v782, 1.0
    %v784 = vmul.f32 %v783, 0.5
    %v785 = vtanh.pop %v780
    %v786 = vmul.f32 %v784, %v704
    %788 = vrot.lane.b32.xlu0 %v785, 64
    %v789 = vpop.permute.xlu0 %788
    %v791 = vmul.f32 %v784, %v789
    %793 = vrot.lane.b32.xlu0 %v791, 32
    %v794 = vpop.permute.xlu0 %793
    %v796 = vadd.f32 %v786, %v794
    %v797 = vtanh.pop %v796
    %799 = vrot.lane.b32.xlu0 %v797, 64
    %v800 = vpop.permute.xlu0 %799
    %v802 = vmul.f32 %v784, %v800
    %v803 = vpack.c.bf16 %v802, %v802
    %v806 = vunpack.c.l.s4 1966171168
    %v807 = vunpack.c.0.s8 %v806
    %v808 = vlaneseq
    %v809 = vshrl.u32 %v808, 7
    %v810 = vsub.s32 %v807, %v809
    %v811 = vrot.slane %v803, %v810
    %v813 = vunpack.c.l.s4 1966171168
    %v814 = vunpack.c.0.s8 %v813
    %v815 = vlaneseq
    %v816 = vshrl.u32 %v815, 7
    %v817 = vsub.s32 %v814, %v816
    %v818 = vrot.slane %v811, %v817
    %819 = vrot.lane.b32.xlu0 %v818, 32
    %v820 = vpop.permute.xlu0 %819
    %s822 = scalar_lea.vmem [#allocation7], 7
    %823 = vst.msk [vmem:[%s822] sm:$0x1] %vm178, %v820
    %v826 = vunpack.c.l.s4 1983009808
    %v827 = vunpack.c.0.s8 %v826
    %v828 = vlaneseq
    %v829 = vshrl.u32 %v828, 7
    %v830 = vsub.s32 %v827, %v829
    %v831 = vrot.slane %v802, %v830
    %832 = vrot.lane.b32.xlu0 %v831, 32
    %v833 = vpop.permute.xlu0 %832
    %vm835 = vcmask 254976
    %836 = vst.msk [vmem:[#allocation8] sm:$0x3] %vm835, %v833
    %v839 = vunpack.c.l.s4 1983009808
    %v840 = vunpack.c.0.s8 %v839
    %v841 = vlaneseq
    %v842 = vshrl.u32 %v841, 7
    %v843 = vsub.s32 %v840, %v842
    %v844 = vrot.slane %v796, %v843
    %845 = vrot.lane.b32.xlu0 %v844, 96
    %v846 = vpop.permute.xlu0 %845
    %848 = vst.msk [vmem:[#allocation10] sm:$0x3] %vm835, %v846
    // Predicated region
    $region30: #{tpu_custom_call.1} parent=1 // pred_check
      _
    $region31: #{tpu_custom_call.1} parent=1 // pred_check_branch
      %850 = sbr.rel (0) target = $region33
    $region32: #{tpu_custom_call.1} parent=1 // pred_region
      %s852 = ssub.s32 128, 128
      %853 = vsyncadd [#allocation4], %s852
      %s854 = sshll.u32 [#allocation7], 4
      %s855 = int_to_ptr.vmem [resolvable:$true] %s854
      %860 = dma.vmem_to_hbm [thread:$0]  %s855, 128, %s4, [#allocation4], 16, 16, 1
    $region33: #{tpu_custom_call.1} parent=1 // pred_fallthru
      _
    // Predicated region
    $region34: #{tpu_custom_call.1} parent=1 // pred_check
      _
    $region35: #{tpu_custom_call.1} parent=1 // pred_check_branch
      %862 = sbr.rel (0) target = $region37
    $region36: #{tpu_custom_call.1} parent=1 // pred_region
      %s864 = ssub.s32 32, 32
      %865 = vsyncadd [#allocation9], %s864
      %s867 = sshll.u32 [#allocation8], 4
      %s868 = int_to_ptr.vmem [resolvable:$true] %s867
      %870 = dma.vmem_to_hbm [thread:$0]  %s868, 32, %s5, [#allocation9]
    $region37: #{tpu_custom_call.1} parent=1 // pred_fallthru
      _
    // Predicated region
    $region38: #{tpu_custom_call.1} parent=1 // pred_check
      _
    $region39: #{tpu_custom_call.1} parent=1 // pred_check_branch
      %872 = sbr.rel (0) target = $region41
    $region40: #{tpu_custom_call.1} parent=1 // pred_region
      %s874 = ssub.s32 32, 32
      %875 = vsyncadd [#allocation9], %s874
      %s877 = sshll.u32 [#allocation10], 4
      %s878 = int_to_ptr.vmem [resolvable:$true] %s877
      %880 = dma.vmem_to_hbm [thread:$0]  %s878, 32, %s6, [#allocation9]
    $region41: #{tpu_custom_call.1} parent=1 // pred_fallthru
      _
    // Predicated region
    $region42: #{tpu_custom_call.1} parent=1 // pred_check
      _
    $region43: #{tpu_custom_call.1} parent=1 // pred_check_branch
      %882 = sbr.rel (0) target = $region45
    $region44: #{tpu_custom_call.1} parent=1 // pred_region
      %883 = dma.done [#allocation4], 128
    $region45: #{tpu_custom_call.1} parent=1 // pred_fallthru
      _
    // Predicated region
    $region46: #{tpu_custom_call.1} parent=1 // pred_check
      _
    $region47: #{tpu_custom_call.1} parent=1 // pred_check_branch
      %885 = sbr.rel (0) target = $region49
    $region48: #{tpu_custom_call.1} parent=1 // pred_region
      %886 = dma.done [#allocation9], 32
    $region49: #{tpu_custom_call.1} parent=1 // pred_fallthru
      _
    // Predicated region
    $region50: #{tpu_custom_call.1} parent=1 // pred_check
      _
    $region51: #{tpu_custom_call.1} parent=1 // pred_check_branch
      %888 = sbr.rel (0) target = $region53
    $region52: #{tpu_custom_call.1} parent=1 // pred_region
      %889 = dma.done [#allocation9], 32
    $region53: #{tpu_custom_call.1} parent=1 // pred_fallthru
      _
    %890 = vsyncpa [#allocation3], 1
    %891 = vsyncpa [#allocation6], 1
    %892 = vsyncpa [#allocation4], 1
    %893 = vsyncpa [#allocation9], 1

</llo_original>
